<compile_context>
chip_gen: v7x
topology: tpu7x:2x2x1
jax: 0.10.0
libtpu: 0.0.40
codegen_flags: <defaults>
</compile_context>

<pallas_src>
import jax
import jax.numpy as jnp
from jax.experimental import pallas as pl
from jax.experimental.pallas import tpu as pltpu

LN_EPS = 1e-5       # PyTorch nn.LayerNorm default eps
NEG_SLOPE = 0.2     # nn.LeakyReLU(0.2)
LANE = 128          # lane width: activations / weight column blocks padded to 128
SUB = 16            # bf16 sublane packing: batch tiles kept multiples of 16


def _round_up(a, m):
    return -(-a // m) * m


# ----------------------------- in-kernel helpers -----------------------------

def _leaky_relu(x):
    return jnp.where(x >= 0, x, NEG_SLOPE * x)


def _layer_norm(y, gamma, beta, n):
    # y: (tb, np) f32 with exact zeros in lanes >= n; gamma/beta zero-padded.
    # sum / sum-of-squares form: the two lane reductions are independent
    # (both XLU units) and there is no second full pass over (y - mean).
    inv_n = 1.0 / float(n)
    s1 = jnp.sum(y, axis=-1, keepdims=True)
    s2 = jnp.sum(y * y, axis=-1, keepdims=True)
    mean = s1 * inv_n
    var = jnp.maximum(s2 * inv_n - mean * mean, 0.0)
    # padded lanes: (0 - mean) * rsqrt * 0 + 0 == 0  -> padding stays zero
    return (y - mean) * jax.lax.rsqrt(var + LN_EPS) * gamma + beta


# ------------------------------- fused kernel --------------------------------

def build_fused_kernel(layout):
    """Whole FeatureDecoder forward in one pallas_call.

    `layout` is a static Python tuple; entries carry row offsets into the
    packed weight buffer, packed-vector row indices and (real, padded) dims.
    """

    def kernel(x_ref, vec_ref, w_ref, o_ref):
        def vrow(row, width):
            return vec_ref[row:row + 1, :width]          # (1, width) f32

        def mm(xb, off, k, n_pad):
            # bf16 operands on the MXU, f32 accumulation; static weight slice.
            w = w_ref[off:off + k, :n_pad]
            return jnp.dot(xb, w, preferred_element_type=jnp.float32)

        xb = x_ref[...]   # bf16 matmul operand for the next linear
        x = None          # f32 activation, lane-padded, padding == 0

        for layer in layout:
            kind = layer[0]
            if kind == "linear_ln_act":
                _, off, k, b_r, g_r, be_r, n, np_ = layer
                y = mm(xb, off, k, np_) + vrow(b_r, np_)
                x = _leaky_relu(_layer_norm(y, vrow(g_r, np_), vrow(be_r, np_), n))
                xb = x.astype(jnp.bfloat16)
                # dropout: identity (eval mode)
            elif kind == "resblock":
                (_, off_f, k, has_proj, bf_r, g1_r, be1_r,
                 off2, b2_r, g2_r, be2_r, n, np_) = layer
                if has_proj:
                    # fused linear1 || shortcut: one N = 2*np_ matmul
                    r = mm(xb, off_f, k, 2 * np_) + vrow(bf_r, 2 * np_)
                    h = r[:, :np_]
                    shortcut = r[:, np_:2 * np_]
                else:
                    h = mm(xb, off_f, k, np_) + vrow(bf_r, np_)
                    shortcut = x                       # identity shortcut
                h = _leaky_relu(_layer_norm(h, vrow(g1_r, np_), vrow(be1_r, np_), n))
                h = mm(h.astype(jnp.bfloat16), off2, np_, np_) + vrow(b2_r, np_)
                h = _layer_norm(h, vrow(g2_r, np_), vrow(be2_r, np_), n)
                x = _leaky_relu(h + shortcut)
                xb = x.astype(jnp.bfloat16)
            elif kind == "attn_folded":
                # Seq-len-1 self-attention: softmax over a singleton axis == 1,
                # so out = x @ (Wv@Wo) + (bv@Wo + bo) + x  (folded at init).
                _, off, k, b_r, np_ = layer
                x = mm(xb, off, k, np_) + vrow(b_r, np_) + x
                xb = x.astype(jnp.bfloat16)
            elif kind == "linear_out":
                _, off, k, b_r, np_ = layer
                x = mm(xb, off, k, np_) + vrow(b_r, np_)  # lane-dense padded out
            else:
                raise ValueError(kind)

        o_ref[...] = x

    return kernel


# ------------------------------ parameter setup -------------------------------

def _spectral_normalize(w, n_iter=50):
    """w: (out, in) PyTorch-shaped weight. Return w / sigma_max(w)."""
    # TODO(synk): PyTorch spectral_norm keeps running u/v buffers (1 iter/step);
    # here a converged power iteration is used at init.
    u = jnp.ones((w.shape[0],), jnp.float32) / jnp.sqrt(float(w.shape[0]))
    v = w.T @ u
    for _ in range(n_iter):
        v = w.T @ u
        v = v / (jnp.linalg.norm(v) + 1e-12)
        u = w @ v
        u = u / (jnp.linalg.norm(u) + 1e-12)
    sigma = u @ (w @ v)
    return w / sigma


def _init_linear(key, in_dim, out_dim, spectral=False):
    """PyTorch-style uniform init. Returns (W (in,out), b (1,out)) in f32."""
    k1, k2 = jax.random.split(key)
    bound = 1.0 / (in_dim ** 0.5)
    w = jax.random.uniform(k1, (out_dim, in_dim), jnp.float32, -bound, bound)
    b = jax.random.uniform(k2, (1, out_dim), jnp.float32, -bound, bound)
    if spectral:
        w = _spectral_normalize(w)
    return w.T, b


def init_feature_decoder(key, input_dim, output_dim, hidden_dims,
                         num_residual_blocks=3):
    keys = iter(jax.random.split(key, 64))

    w_slabs = []      # (k_slot, width_i) f32 pieces -> packed into one bf16 buf
    vec_rows = []     # 1-D f32 rows -> packed into one (NV, VEC_W) buffer
    layout = []
    cur = [0]

    def make_slab(k_slice, width, pieces):
        # pieces: list of (row0, col0, dense block (k, n))
        slab = jnp.zeros((_round_up(k_slice, SUB), width), jnp.float32)
        for (r0, c0, blk) in pieces:
            slab = slab.at[r0:r0 + blk.shape[0], c0:c0 + blk.shape[1]].set(blk)
        return slab

    def add_w(slab):
        off = cur[0]
        cur[0] += slab.shape[0]
        w_slabs.append(slab)
        return off

    def add_v(parts):
        # parts: list of (col0, vec (1, n)); packs into one lane-padded row
        width = max(c0 + v.shape[1] for c0, v in parts)
        row = jnp.zeros((_round_up(width, LANE),), jnp.float32)
        for c0, v in parts:
            row = row.at[c0:c0 + v.shape[1]].set(jnp.ravel(v))
        vec_rows.append(row)
        return len(vec_rows) - 1

    ones = lambda d: jnp.ones((1, d), jnp.float32)
    zeros = lambda d: jnp.zeros((1, d), jnp.float32)

    # --- input_projection: Linear + LayerNorm + act (+ dropout=identity) ---
    d0 = hidden_dims[0]
    np0 = _round_up(d0, LANE)
    w, b = _init_linear(next(keys), input_dim, d0, spectral=False)
    off = add_w(make_slab(input_dim, np0, [(0, 0, w)]))
    layout.append(("linear_ln_act", off, input_dim,
                   add_v([(0, b)]), add_v([(0, ones(d0))]), add_v([(0, zeros(d0))]),
                   d0, np0))
    prev_n, prev_np = d0, np0

    # --- residual blocks ---
    for i in range(num_residual_blocks):
        in_dim = hidden_dims[0] if i == 0 else hidden_dims[min(i, len(hidden_dims) - 1)]
        out_dim = hidden_dims[min(i + 1, len(hidden_dims) - 1)]
        assert in_dim == prev_n
        npo = _round_up(out_dim, LANE)
        w1, b1 = _init_linear(next(keys), in_dim, out_dim, spectral=True)
        w2, b2 = _init_linear(next(keys), out_dim, out_dim, spectral=True)
        has_proj = in_dim != out_dim
        if has_proj:
            wsc, bsc = _init_linear(next(keys), in_dim, out_dim, spectral=True)
            # fuse linear1 and shortcut along the output dim (two 128-aligned blocks)
            slab_f = make_slab(prev_np, 2 * npo, [(0, 0, w1), (0, npo, wsc)])
            bf_r = add_v([(0, b1), (npo, bsc)])
        else:
            slab_f = make_slab(prev_np, npo, [(0, 0, w1)])
            bf_r = add_v([(0, b1)])
        off_f = add_w(slab_f)
        off2 = add_w(make_slab(npo, npo, [(0, 0, w2)]))
        layout.append(("resblock", off_f, prev_np, has_proj, bf_r,
                       add_v([(0, ones(out_dim))]), add_v([(0, zeros(out_dim))]),
                       off2, add_v([(0, b2)]),
                       add_v([(0, ones(out_dim))]), add_v([(0, zeros(out_dim))]),
                       out_dim, npo))
        prev_n, prev_np = out_dim, npo

    # --- self-attention on (B, 1, D): only Wv/Wo matter (softmax of 1x1 == 1) ---
    attn_dim = hidden_dims[min(num_residual_blocks, len(hidden_dims) - 1)]
    assert attn_dim == prev_n
    wv, bv = _init_linear(next(keys), attn_dim, attn_dim)
    wo, bo = _init_linear(next(keys), attn_dim, attn_dim)
    w_vo = wv @ wo                  # (d, d): x @ Wv @ Wo
    b_vo = bv @ wo + bo             # (1, d)
    off = add_w(make_slab(prev_np, prev_np, [(0, 0, w_vo)]))
    layout.append(("attn_folded", off, prev_np, add_v([(0, b_vo)]), prev_np))

    # --- mlp_layers: Linear + LN + act (+ dropout=identity) ---
    for i in range(min(num_residual_blocks, len(hidden_dims) - 1), len(hidden_dims) - 1):
        assert hidden_dims[i] == prev_n
        d = hidden_dims[i + 1]
        npd = _round_up(d, LANE)
        w, b = _init_linear(next(keys), hidden_dims[i], d, spectral=True)
        off = add_w(make_slab(prev_np, npd, [(0, 0, w)]))
        layout.append(("linear_ln_act", off, prev_np,
                       add_v([(0, b)]), add_v([(0, ones(d))]), add_v([(0, zeros(d))]),
                       d, npd))
        prev_n, prev_np = d, npd

    # --- output layer, lane-dense padded block (wrapper slices :output_dim) ---
    out_np = _round_up(output_dim, LANE)
    w, b = _init_linear(next(keys), hidden_dims[-1], output_dim)
    off = add_w(make_slab(prev_np, out_np, [(0, 0, w)]))
    layout.append(("linear_out", off, prev_np, add_v([(0, b)]), out_np))

    # --- pack the single bf16 weight buffer and the single f32 vec buffer ---
    wbuf_w = max(s.shape[1] for s in w_slabs)
    wbuf = jnp.concatenate(
        [jnp.pad(s, ((0, 0), (0, wbuf_w - s.shape[1]))) for s in w_slabs],
        axis=0).astype(jnp.bfloat16)

    vec_w = max(wbuf_w, max(r.shape[0] for r in vec_rows))
    nv = _round_up(len(vec_rows), 8)
    vecs = jnp.zeros((nv, vec_w), jnp.float32)
    for i, r in enumerate(vec_rows):
        vecs = vecs.at[i, :r.shape[0]].set(r)

    return {"wbuf": wbuf, "vecs": vecs, "layout": tuple(layout),
            "input_dim": input_dim, "output_dim": output_dim, "out_pad": out_np}


# ------------------------------ forward wrapper -------------------------------

def feature_decoder_forward(x, params, tile_b=512):
    wbuf = params["wbuf"]
    vecs = params["vecs"]
    layout = params["layout"]
    output_dim = params["output_dim"]
    out_pad = params["out_pad"]

    B, in_dim = x.shape
    assert in_dim == params["input_dim"]

    # Pad batch to a multiple of 16 (bf16 sublane packing).  Pick the tile so
    # the grid has >= 2 steps whenever possible: the "parallel" axis then
    # shards across v7x's two TensorCores; large batches amortize the ~0.35 us
    # per-step overhead with tile_b=512.
    b_pad = _round_up(max(B, SUB), SUB)
    if b_pad >= 2 * SUB:
        tb = min(tile_b, _round_up(-(-b_pad // 2), SUB))
    else:
        tb = b_pad
    b_pad = _round_up(b_pad, tb)
    if b_pad != B:
        x = jnp.pad(x, ((0, b_pad - B), (0, 0)))

    xb = x.astype(jnp.bfloat16)   # first use is a bf16 matmul; halves input DMA

    kernel = build_fused_kernel(layout)

    out = pl.pallas_call(
        kernel,
        out_shape=jax.ShapeDtypeStruct((b_pad, out_pad), jnp.float32),
        grid=(b_pad // tb,),
        in_specs=[
            pl.BlockSpec((tb, in_dim), lambda i: (i, 0)),        # activation tile
            pl.BlockSpec(vecs.shape, lambda i: (0, 0)),          # packed vectors
            pl.BlockSpec(wbuf.shape, lambda i: (0, 0)),          # packed weights
        ],
        out_specs=pl.BlockSpec((tb, out_pad), lambda i: (i, 0)),
        compiler_params=pltpu.CompilerParams(
            dimension_semantics=("parallel",)),
    )(xb, vecs, wbuf)

    return out[:B, :output_dim]


# ----------------------------------- main -------------------------------------

if __name__ == "__main__":
    key = jax.random.PRNGKey(0)
    k_param, k_x = jax.random.split(key)

    # small, module-consistent shapes
    B = 4
    input_dim = 32
    output_dim = 4
    hidden_dims = [64, 128, 64, 32, 16]
    num_residual_blocks = 3

    params = init_feature_decoder(k_param, input_dim, output_dim, hidden_dims,
                                  num_residual_blocks)
    x = jax.random.normal(k_x, (B, input_dim), jnp.float32)

    out = feature_decoder_forward(x, params)
    out = jax.block_until_ready(out)
    assert out.shape == (B, output_dim), out.shape
    assert bool(jnp.all(jnp.isfinite(out)))
    print("KERNEL_OK")
</pallas_src>

<mosaic_0001>
module attributes {stable_mosaic.version = 11 : i64} {
  func.func @kernel(%arg0: i32, %arg1: memref<16x32xbf16, #tpu.memory_space<vmem>>, %arg2: memref<32x256xf32, #tpu.memory_space<vmem>>, %arg3: memref<1184x256xbf16, #tpu.memory_space<vmem>>, %arg4: memref<16x128xf32, #tpu.memory_space<vmem>>) attributes {dimension_semantics = [#tpu.dimension_semantics<parallel>], iteration_bounds = array<i64: 1>, scalar_prefetch = 0 : i64, scratch_operands = 0 : i64, tpu.core_type = #tpu.core_type<tc>, window_params = [{transform_indices = @transform_0, window_bounds = array<i64: 16, 32>}, {pipeline_mode = #tpu.pipeline_mode<synchronous>, transform_indices = @transform_1, window_bounds = array<i64: 32, 256>}, {pipeline_mode = #tpu.pipeline_mode<synchronous>, transform_indices = @transform_2, window_bounds = array<i64: 1184, 256>}, {transform_indices = @transform_3, window_bounds = array<i64: 16, 128>}]} {
    %c0 = arith.constant 0 : index
    %c0_0 = arith.constant 0 : index
    %0 = vector.load %arg1[%c0, %c0_0] : memref<16x32xbf16, #tpu.memory_space<vmem>>, vector<16x32xbf16>
    %c0_1 = arith.constant 0 : index
    %c0_2 = arith.constant 0 : index
    %1 = vector.load %arg3[%c0_1, %c0_2] : memref<1184x256xbf16, #tpu.memory_space<vmem>>, vector<32x128xbf16>
    %cst = arith.constant dense<0.000000e+00> : vector<16x128xf32>
    %2 = tpu.matmul %0, %1, %cst {dimension_numbers = #tpu.dot_dimension_numbers<[1], [0], [0], [1], [0, 0, 1, 1], [], []>} : vector<16x32xbf16>, vector<32x128xbf16>, vector<16x128xf32> -> vector<16x128xf32>
    %c0_3 = arith.constant 0 : index
    %c0_4 = arith.constant 0 : index
    %3 = vector.load %arg2[%c0_3, %c0_4] : memref<32x256xf32, #tpu.memory_space<vmem>>, vector<1x128xf32>
    %4 = vector.broadcast %3 : vector<1x128xf32> to vector<16x128xf32>
    %5 = arith.addf %2, %4 : vector<16x128xf32>
    %c1 = arith.constant 1 : index
    %c0_5 = arith.constant 0 : index
    %6 = vector.load %arg2[%c1, %c0_5] : memref<32x256xf32, #tpu.memory_space<vmem>>, vector<1x128xf32>
    %c2 = arith.constant 2 : index
    %c0_6 = arith.constant 0 : index
    %7 = vector.load %arg2[%c2, %c0_6] : memref<32x256xf32, #tpu.memory_space<vmem>>, vector<1x128xf32>
    %cst_7 = arith.constant dense<0.000000e+00> : vector<16xf32>
    %8 = vector.multi_reduction <add>, %5, %cst_7 [1] : vector<16x128xf32> to vector<16xf32>
    %9 = vector.shape_cast %8 : vector<16xf32> to vector<16x1xf32>
    %10 = arith.mulf %5, %5 : vector<16x128xf32>
    %cst_8 = arith.constant dense<0.000000e+00> : vector<16xf32>
    %11 = vector.multi_reduction <add>, %10, %cst_8 [1] : vector<16x128xf32> to vector<16xf32>
    %12 = vector.shape_cast %11 : vector<16xf32> to vector<16x1xf32>
    %cst_9 = arith.constant 1.562500e-02 : f32
    %13 = vector.broadcast %cst_9 : f32 to vector<16x1xf32>
    %14 = arith.mulf %9, %13 : vector<16x1xf32>
    %cst_10 = arith.constant 1.562500e-02 : f32
    %15 = vector.broadcast %cst_10 : f32 to vector<16x1xf32>
    %16 = arith.mulf %12, %15 : vector<16x1xf32>
    %17 = arith.mulf %14, %14 : vector<16x1xf32>
    %18 = arith.subf %16, %17 : vector<16x1xf32>
    %cst_11 = arith.constant 0.000000e+00 : f32
    %19 = vector.broadcast %cst_11 : f32 to vector<16x1xf32>
    %20 = arith.maximumf %18, %19 : vector<16x1xf32>
    %21 = vector.broadcast %14 : vector<16x1xf32> to vector<16x128xf32>
    %22 = arith.subf %5, %21 : vector<16x128xf32>
    %cst_12 = arith.constant 9.99999974E-6 : f32
    %23 = vector.broadcast %cst_12 : f32 to vector<16x1xf32>
    %24 = arith.addf %20, %23 : vector<16x1xf32>
    %25 = math.rsqrt %24 : vector<16x1xf32>
    %26 = vector.broadcast %25 : vector<16x1xf32> to vector<16x128xf32>
    %27 = arith.mulf %22, %26 : vector<16x128xf32>
    %28 = vector.broadcast %6 : vector<1x128xf32> to vector<16x128xf32>
    %29 = arith.mulf %27, %28 : vector<16x128xf32>
    %30 = vector.broadcast %7 : vector<1x128xf32> to vector<16x128xf32>
    %31 = arith.addf %29, %30 : vector<16x128xf32>
    %cst_13 = arith.constant 0.000000e+00 : f32
    %32 = vector.broadcast %cst_13 : f32 to vector<16x128xf32>
    %33 = arith.cmpf oge, %31, %32 : vector<16x128xf32>
    %cst_14 = arith.constant 2.000000e-01 : f32
    %34 = vector.broadcast %cst_14 : f32 to vector<16x128xf32>
    %35 = arith.mulf %34, %31 : vector<16x128xf32>
    %36 = arith.select %33, %31, %35 : vector<16x128xi1>, vector<16x128xf32>
    %37 = arith.truncf %36 : vector<16x128xf32> to vector<16x128xbf16>
    %c32 = arith.constant 32 : index
    %c0_15 = arith.constant 0 : index
    %38 = vector.load %arg3[%c32, %c0_15] : memref<1184x256xbf16, #tpu.memory_space<vmem>>, vector<128x256xbf16>
    %cst_16 = arith.constant dense<0.000000e+00> : vector<16x256xf32>
    %39 = tpu.matmul %37, %38, %cst_16 {dimension_numbers = #tpu.dot_dimension_numbers<[1], [0], [0], [1], [0, 0, 1, 1], [], []>} : vector<16x128xbf16>, vector<128x256xbf16>, vector<16x256xf32> -> vector<16x256xf32>
    %c3 = arith.constant 3 : index
    %c0_17 = arith.constant 0 : index
    %40 = vector.load %arg2[%c3, %c0_17] : memref<32x256xf32, #tpu.memory_space<vmem>>, vector<1x256xf32>
    %41 = vector.broadcast %40 : vector<1x256xf32> to vector<16x256xf32>
    %42 = arith.addf %39, %41 : vector<16x256xf32>
    %43 = vector.extract_strided_slice %42 {offsets = [0, 0], sizes = [16, 128], strides = [1, 1]} : vector<16x256xf32> to vector<16x128xf32>
    %44 = vector.extract_strided_slice %42 {offsets = [0, 128], sizes = [16, 128], strides = [1, 1]} : vector<16x256xf32> to vector<16x128xf32>
    %c4 = arith.constant 4 : index
    %c0_18 = arith.constant 0 : index
    %45 = vector.load %arg2[%c4, %c0_18] : memref<32x256xf32, #tpu.memory_space<vmem>>, vector<1x128xf32>
    %c5 = arith.constant 5 : index
    %c0_19 = arith.constant 0 : index
    %46 = vector.load %arg2[%c5, %c0_19] : memref<32x256xf32, #tpu.memory_space<vmem>>, vector<1x128xf32>
    %cst_20 = arith.constant dense<0.000000e+00> : vector<16xf32>
    %47 = vector.multi_reduction <add>, %43, %cst_20 [1] : vector<16x128xf32> to vector<16xf32>
    %48 = vector.shape_cast %47 : vector<16xf32> to vector<16x1xf32>
    %49 = arith.mulf %43, %43 : vector<16x128xf32>
    %cst_21 = arith.constant dense<0.000000e+00> : vector<16xf32>
    %50 = vector.multi_reduction <add>, %49, %cst_21 [1] : vector<16x128xf32> to vector<16xf32>
    %51 = vector.shape_cast %50 : vector<16xf32> to vector<16x1xf32>
    %cst_22 = arith.constant 7.812500e-03 : f32
    %52 = vector.broadcast %cst_22 : f32 to vector<16x1xf32>
    %53 = arith.mulf %48, %52 : vector<16x1xf32>
    %cst_23 = arith.constant 7.812500e-03 : f32
    %54 = vector.broadcast %cst_23 : f32 to vector<16x1xf32>
    %55 = arith.mulf %51, %54 : vector<16x1xf32>
    %56 = arith.mulf %53, %53 : vector<16x1xf32>
    %57 = arith.subf %55, %56 : vector<16x1xf32>
    %cst_24 = arith.constant 0.000000e+00 : f32
    %58 = vector.broadcast %cst_24 : f32 to vector<16x1xf32>
    %59 = arith.maximumf %57, %58 : vector<16x1xf32>
    %60 = vector.broadcast %53 : vector<16x1xf32> to vector<16x128xf32>
    %61 = arith.subf %43, %60 : vector<16x128xf32>
    %cst_25 = arith.constant 9.99999974E-6 : f32
    %62 = vector.broadcast %cst_25 : f32 to vector<16x1xf32>
    %63 = arith.addf %59, %62 : vector<16x1xf32>
    %64 = math.rsqrt %63 : vector<16x1xf32>
    %65 = vector.broadcast %64 : vector<16x1xf32> to vector<16x128xf32>
    %66 = arith.mulf %61, %65 : vector<16x128xf32>
    %67 = vector.broadcast %45 : vector<1x128xf32> to vector<16x128xf32>
    %68 = arith.mulf %66, %67 : vector<16x128xf32>
    %69 = vector.broadcast %46 : vector<1x128xf32> to vector<16x128xf32>
    %70 = arith.addf %68, %69 : vector<16x128xf32>
    %cst_26 = arith.constant 0.000000e+00 : f32
    %71 = vector.broadcast %cst_26 : f32 to vector<16x128xf32>
    %72 = arith.cmpf oge, %70, %71 : vector<16x128xf32>
    %cst_27 = arith.constant 2.000000e-01 : f32
    %73 = vector.broadcast %cst_27 : f32 to vector<16x128xf32>
    %74 = arith.mulf %73, %70 : vector<16x128xf32>
    %75 = arith.select %72, %70, %74 : vector<16x128xi1>, vector<16x128xf32>
    %76 = arith.truncf %75 : vector<16x128xf32> to vector<16x128xbf16>
    %c160 = arith.constant 160 : index
    %c0_28 = arith.constant 0 : index
    %77 = vector.load %arg3[%c160, %c0_28] : memref<1184x256xbf16, #tpu.memory_space<vmem>>, vector<128x128xbf16>
    %cst_29 = arith.constant dense<0.000000e+00> : vector<16x128xf32>
    %78 = tpu.matmul %76, %77, %cst_29 {dimension_numbers = #tpu.dot_dimension_numbers<[1], [0], [0], [1], [0, 0, 1, 1], [], []>} : vector<16x128xbf16>, vector<128x128xbf16>, vector<16x128xf32> -> vector<16x128xf32>
    %c6 = arith.constant 6 : index
    %c0_30 = arith.constant 0 : index
    %79 = vector.load %arg2[%c6, %c0_30] : memref<32x256xf32, #tpu.memory_space<vmem>>, vector<1x128xf32>
    %80 = vector.broadcast %79 : vector<1x128xf32> to vector<16x128xf32>
    %81 = arith.addf %78, %80 : vector<16x128xf32>
    %c7 = arith.constant 7 : index
    %c0_31 = arith.constant 0 : index
    %82 = vector.load %arg2[%c7, %c0_31] : memref<32x256xf32, #tpu.memory_space<vmem>>, vector<1x128xf32>
    %c8 = arith.constant 8 : index
    %c0_32 = arith.constant 0 : index
    %83 = vector.load %arg2[%c8, %c0_32] : memref<32x256xf32, #tpu.memory_space<vmem>>, vector<1x128xf32>
    %cst_33 = arith.constant dense<0.000000e+00> : vector<16xf32>
    %84 = vector.multi_reduction <add>, %81, %cst_33 [1] : vector<16x128xf32> to vector<16xf32>
    %85 = vector.shape_cast %84 : vector<16xf32> to vector<16x1xf32>
    %86 = arith.mulf %81, %81 : vector<16x128xf32>
    %cst_34 = arith.constant dense<0.000000e+00> : vector<16xf32>
    %87 = vector.multi_reduction <add>, %86, %cst_34 [1] : vector<16x128xf32> to vector<16xf32>
    %88 = vector.shape_cast %87 : vector<16xf32> to vector<16x1xf32>
    %cst_35 = arith.constant 7.812500e-03 : f32
    %89 = vector.broadcast %cst_35 : f32 to vector<16x1xf32>
    %90 = arith.mulf %85, %89 : vector<16x1xf32>
    %cst_36 = arith.constant 7.812500e-03 : f32
    %91 = vector.broadcast %cst_36 : f32 to vector<16x1xf32>
    %92 = arith.mulf %88, %91 : vector<16x1xf32>
    %93 = arith.mulf %90, %90 : vector<16x1xf32>
    %94 = arith.subf %92, %93 : vector<16x1xf32>
    %cst_37 = arith.constant 0.000000e+00 : f32
    %95 = vector.broadcast %cst_37 : f32 to vector<16x1xf32>
    %96 = arith.maximumf %94, %95 : vector<16x1xf32>
    %97 = vector.broadcast %90 : vector<16x1xf32> to vector<16x128xf32>
    %98 = arith.subf %81, %97 : vector<16x128xf32>
    %cst_38 = arith.constant 9.99999974E-6 : f32
    %99 = vector.broadcast %cst_38 : f32 to vector<16x1xf32>
    %100 = arith.addf %96, %99 : vector<16x1xf32>
    %101 = math.rsqrt %100 : vector<16x1xf32>
    %102 = vector.broadcast %101 : vector<16x1xf32> to vector<16x128xf32>
    %103 = arith.mulf %98, %102 : vector<16x128xf32>
    %104 = vector.broadcast %82 : vector<1x128xf32> to vector<16x128xf32>
    %105 = arith.mulf %103, %104 : vector<16x128xf32>
    %106 = vector.broadcast %83 : vector<1x128xf32> to vector<16x128xf32>
    %107 = arith.addf %105, %106 : vector<16x128xf32>
    %108 = arith.addf %107, %44 : vector<16x128xf32>
    %cst_39 = arith.constant 0.000000e+00 : f32
    %109 = vector.broadcast %cst_39 : f32 to vector<16x128xf32>
    %110 = arith.cmpf oge, %108, %109 : vector<16x128xf32>
    %cst_40 = arith.constant 2.000000e-01 : f32
    %111 = vector.broadcast %cst_40 : f32 to vector<16x128xf32>
    %112 = arith.mulf %111, %108 : vector<16x128xf32>
    %113 = arith.select %110, %108, %112 : vector<16x128xi1>, vector<16x128xf32>
    %114 = arith.truncf %113 : vector<16x128xf32> to vector<16x128xbf16>
    %c288 = arith.constant 288 : index
    %c0_41 = arith.constant 0 : index
    %115 = vector.load %arg3[%c288, %c0_41] : memref<1184x256xbf16, #tpu.memory_space<vmem>>, vector<128x256xbf16>
    %cst_42 = arith.constant dense<0.000000e+00> : vector<16x256xf32>
    %116 = tpu.matmul %114, %115, %cst_42 {dimension_numbers = #tpu.dot_dimension_numbers<[1], [0], [0], [1], [0, 0, 1, 1], [], []>} : vector<16x128xbf16>, vector<128x256xbf16>, vector<16x256xf32> -> vector<16x256xf32>
    %c9 = arith.constant 9 : index
    %c0_43 = arith.constant 0 : index
    %117 = vector.load %arg2[%c9, %c0_43] : memref<32x256xf32, #tpu.memory_space<vmem>>, vector<1x256xf32>
    %118 = vector.broadcast %117 : vector<1x256xf32> to vector<16x256xf32>
    %119 = arith.addf %116, %118 : vector<16x256xf32>
    %120 = vector.extract_strided_slice %119 {offsets = [0, 0], sizes = [16, 128], strides = [1, 1]} : vector<16x256xf32> to vector<16x128xf32>
    %121 = vector.extract_strided_slice %119 {offsets = [0, 128], sizes = [16, 128], strides = [1, 1]} : vector<16x256xf32> to vector<16x128xf32>
    %c10 = arith.constant 10 : index
    %c0_44 = arith.constant 0 : index
    %122 = vector.load %arg2[%c10, %c0_44] : memref<32x256xf32, #tpu.memory_space<vmem>>, vector<1x128xf32>
    %c11 = arith.constant 11 : index
    %c0_45 = arith.constant 0 : index
    %123 = vector.load %arg2[%c11, %c0_45] : memref<32x256xf32, #tpu.memory_space<vmem>>, vector<1x128xf32>
    %cst_46 = arith.constant dense<0.000000e+00> : vector<16xf32>
    %124 = vector.multi_reduction <add>, %120, %cst_46 [1] : vector<16x128xf32> to vector<16xf32>
    %125 = vector.shape_cast %124 : vector<16xf32> to vector<16x1xf32>
    %126 = arith.mulf %120, %120 : vector<16x128xf32>
    %cst_47 = arith.constant dense<0.000000e+00> : vector<16xf32>
    %127 = vector.multi_reduction <add>, %126, %cst_47 [1] : vector<16x128xf32> to vector<16xf32>
    %128 = vector.shape_cast %127 : vector<16xf32> to vector<16x1xf32>
    %cst_48 = arith.constant 1.562500e-02 : f32
    %129 = vector.broadcast %cst_48 : f32 to vector<16x1xf32>
    %130 = arith.mulf %125, %129 : vector<16x1xf32>
    %cst_49 = arith.constant 1.562500e-02 : f32
    %131 = vector.broadcast %cst_49 : f32 to vector<16x1xf32>
    %132 = arith.mulf %128, %131 : vector<16x1xf32>
    %133 = arith.mulf %130, %130 : vector<16x1xf32>
    %134 = arith.subf %132, %133 : vector<16x1xf32>
    %cst_50 = arith.constant 0.000000e+00 : f32
    %135 = vector.broadcast %cst_50 : f32 to vector<16x1xf32>
    %136 = arith.maximumf %134, %135 : vector<16x1xf32>
    %137 = vector.broadcast %130 : vector<16x1xf32> to vector<16x128xf32>
    %138 = arith.subf %120, %137 : vector<16x128xf32>
    %cst_51 = arith.constant 9.99999974E-6 : f32
    %139 = vector.broadcast %cst_51 : f32 to vector<16x1xf32>
    %140 = arith.addf %136, %139 : vector<16x1xf32>
    %141 = math.rsqrt %140 : vector<16x1xf32>
    %142 = vector.broadcast %141 : vector<16x1xf32> to vector<16x128xf32>
    %143 = arith.mulf %138, %142 : vector<16x128xf32>
    %144 = vector.broadcast %122 : vector<1x128xf32> to vector<16x128xf32>
    %145 = arith.mulf %143, %144 : vector<16x128xf32>
    %146 = vector.broadcast %123 : vector<1x128xf32> to vector<16x128xf32>
    %147 = arith.addf %145, %146 : vector<16x128xf32>
    %cst_52 = arith.constant 0.000000e+00 : f32
    %148 = vector.broadcast %cst_52 : f32 to vector<16x128xf32>
    %149 = arith.cmpf oge, %147, %148 : vector<16x128xf32>
    %cst_53 = arith.constant 2.000000e-01 : f32
    %150 = vector.broadcast %cst_53 : f32 to vector<16x128xf32>
    %151 = arith.mulf %150, %147 : vector<16x128xf32>
    %152 = arith.select %149, %147, %151 : vector<16x128xi1>, vector<16x128xf32>
    %153 = arith.truncf %152 : vector<16x128xf32> to vector<16x128xbf16>
    %c416 = arith.constant 416 : index
    %c0_54 = arith.constant 0 : index
    %154 = vector.load %arg3[%c416, %c0_54] : memref<1184x256xbf16, #tpu.memory_space<vmem>>, vector<128x128xbf16>
    %cst_55 = arith.constant dense<0.000000e+00> : vector<16x128xf32>
    %155 = tpu.matmul %153, %154, %cst_55 {dimension_numbers = #tpu.dot_dimension_numbers<[1], [0], [0], [1], [0, 0, 1, 1], [], []>} : vector<16x128xbf16>, vector<128x128xbf16>, vector<16x128xf32> -> vector<16x128xf32>
    %c12 = arith.constant 12 : index
    %c0_56 = arith.constant 0 : index
    %156 = vector.load %arg2[%c12, %c0_56] : memref<32x256xf32, #tpu.memory_space<vmem>>, vector<1x128xf32>
    %157 = vector.broadcast %156 : vector<1x128xf32> to vector<16x128xf32>
    %158 = arith.addf %155, %157 : vector<16x128xf32>
    %c13 = arith.constant 13 : index
    %c0_57 = arith.constant 0 : index
    %159 = vector.load %arg2[%c13, %c0_57] : memref<32x256xf32, #tpu.memory_space<vmem>>, vector<1x128xf32>
    %c14 = arith.constant 14 : index
    %c0_58 = arith.constant 0 : index
    %160 = vector.load %arg2[%c14, %c0_58] : memref<32x256xf32, #tpu.memory_space<vmem>>, vector<1x128xf32>
    %cst_59 = arith.constant dense<0.000000e+00> : vector<16xf32>
    %161 = vector.multi_reduction <add>, %158, %cst_59 [1] : vector<16x128xf32> to vector<16xf32>
    %162 = vector.shape_cast %161 : vector<16xf32> to vector<16x1xf32>
    %163 = arith.mulf %158, %158 : vector<16x128xf32>
    %cst_60 = arith.constant dense<0.000000e+00> : vector<16xf32>
    %164 = vector.multi_reduction <add>, %163, %cst_60 [1] : vector<16x128xf32> to vector<16xf32>
    %165 = vector.shape_cast %164 : vector<16xf32> to vector<16x1xf32>
    %cst_61 = arith.constant 1.562500e-02 : f32
    %166 = vector.broadcast %cst_61 : f32 to vector<16x1xf32>
    %167 = arith.mulf %162, %166 : vector<16x1xf32>
    %cst_62 = arith.constant 1.562500e-02 : f32
    %168 = vector.broadcast %cst_62 : f32 to vector<16x1xf32>
    %169 = arith.mulf %165, %168 : vector<16x1xf32>
    %170 = arith.mulf %167, %167 : vector<16x1xf32>
    %171 = arith.subf %169, %170 : vector<16x1xf32>
    %cst_63 = arith.constant 0.000000e+00 : f32
    %172 = vector.broadcast %cst_63 : f32 to vector<16x1xf32>
    %173 = arith.maximumf %171, %172 : vector<16x1xf32>
    %174 = vector.broadcast %167 : vector<16x1xf32> to vector<16x128xf32>
    %175 = arith.subf %158, %174 : vector<16x128xf32>
    %cst_64 = arith.constant 9.99999974E-6 : f32
    %176 = vector.broadcast %cst_64 : f32 to vector<16x1xf32>
    %177 = arith.addf %173, %176 : vector<16x1xf32>
    %178 = math.rsqrt %177 : vector<16x1xf32>
    %179 = vector.broadcast %178 : vector<16x1xf32> to vector<16x128xf32>
    %180 = arith.mulf %175, %179 : vector<16x128xf32>
    %181 = vector.broadcast %159 : vector<1x128xf32> to vector<16x128xf32>
    %182 = arith.mulf %180, %181 : vector<16x128xf32>
    %183 = vector.broadcast %160 : vector<1x128xf32> to vector<16x128xf32>
    %184 = arith.addf %182, %183 : vector<16x128xf32>
    %185 = arith.addf %184, %121 : vector<16x128xf32>
    %cst_65 = arith.constant 0.000000e+00 : f32
    %186 = vector.broadcast %cst_65 : f32 to vector<16x128xf32>
    %187 = arith.cmpf oge, %185, %186 : vector<16x128xf32>
    %cst_66 = arith.constant 2.000000e-01 : f32
    %188 = vector.broadcast %cst_66 : f32 to vector<16x128xf32>
    %189 = arith.mulf %188, %185 : vector<16x128xf32>
    %190 = arith.select %187, %185, %189 : vector<16x128xi1>, vector<16x128xf32>
    %191 = arith.truncf %190 : vector<16x128xf32> to vector<16x128xbf16>
    %c544 = arith.constant 544 : index
    %c0_67 = arith.constant 0 : index
    %192 = vector.load %arg3[%c544, %c0_67] : memref<1184x256xbf16, #tpu.memory_space<vmem>>, vector<128x256xbf16>
    %cst_68 = arith.constant dense<0.000000e+00> : vector<16x256xf32>
    %193 = tpu.matmul %191, %192, %cst_68 {dimension_numbers = #tpu.dot_dimension_numbers<[1], [0], [0], [1], [0, 0, 1, 1], [], []>} : vector<16x128xbf16>, vector<128x256xbf16>, vector<16x256xf32> -> vector<16x256xf32>
    %c15 = arith.constant 15 : index
    %c0_69 = arith.constant 0 : index
    %194 = vector.load %arg2[%c15, %c0_69] : memref<32x256xf32, #tpu.memory_space<vmem>>, vector<1x256xf32>
    %195 = vector.broadcast %194 : vector<1x256xf32> to vector<16x256xf32>
    %196 = arith.addf %193, %195 : vector<16x256xf32>
    %197 = vector.extract_strided_slice %196 {offsets = [0, 0], sizes = [16, 128], strides = [1, 1]} : vector<16x256xf32> to vector<16x128xf32>
    %198 = vector.extract_strided_slice %196 {offsets = [0, 128], sizes = [16, 128], strides = [1, 1]} : vector<16x256xf32> to vector<16x128xf32>
    %c16 = arith.constant 16 : index
    %c0_70 = arith.constant 0 : index
    %199 = vector.load %arg2[%c16, %c0_70] : memref<32x256xf32, #tpu.memory_space<vmem>>, vector<1x128xf32>
    %c17 = arith.constant 17 : index
    %c0_71 = arith.constant 0 : index
    %200 = vector.load %arg2[%c17, %c0_71] : memref<32x256xf32, #tpu.memory_space<vmem>>, vector<1x128xf32>
    %cst_72 = arith.constant dense<0.000000e+00> : vector<16xf32>
    %201 = vector.multi_reduction <add>, %197, %cst_72 [1] : vector<16x128xf32> to vector<16xf32>
    %202 = vector.shape_cast %201 : vector<16xf32> to vector<16x1xf32>
    %203 = arith.mulf %197, %197 : vector<16x128xf32>
    %cst_73 = arith.constant dense<0.000000e+00> : vector<16xf32>
    %204 = vector.multi_reduction <add>, %203, %cst_73 [1] : vector<16x128xf32> to vector<16xf32>
    %205 = vector.shape_cast %204 : vector<16xf32> to vector<16x1xf32>
    %cst_74 = arith.constant 3.125000e-02 : f32
    %206 = vector.broadcast %cst_74 : f32 to vector<16x1xf32>
    %207 = arith.mulf %202, %206 : vector<16x1xf32>
    %cst_75 = arith.constant 3.125000e-02 : f32
    %208 = vector.broadcast %cst_75 : f32 to vector<16x1xf32>
    %209 = arith.mulf %205, %208 : vector<16x1xf32>
    %210 = arith.mulf %207, %207 : vector<16x1xf32>
    %211 = arith.subf %209, %210 : vector<16x1xf32>
    %cst_76 = arith.constant 0.000000e+00 : f32
    %212 = vector.broadcast %cst_76 : f32 to vector<16x1xf32>
    %213 = arith.maximumf %211, %212 : vector<16x1xf32>
    %214 = vector.broadcast %207 : vector<16x1xf32> to vector<16x128xf32>
    %215 = arith.subf %197, %214 : vector<16x128xf32>
    %cst_77 = arith.constant 9.99999974E-6 : f32
    %216 = vector.broadcast %cst_77 : f32 to vector<16x1xf32>
    %217 = arith.addf %213, %216 : vector<16x1xf32>
    %218 = math.rsqrt %217 : vector<16x1xf32>
    %219 = vector.broadcast %218 : vector<16x1xf32> to vector<16x128xf32>
    %220 = arith.mulf %215, %219 : vector<16x128xf32>
    %221 = vector.broadcast %199 : vector<1x128xf32> to vector<16x128xf32>
    %222 = arith.mulf %220, %221 : vector<16x128xf32>
    %223 = vector.broadcast %200 : vector<1x128xf32> to vector<16x128xf32>
    %224 = arith.addf %222, %223 : vector<16x128xf32>
    %cst_78 = arith.constant 0.000000e+00 : f32
    %225 = vector.broadcast %cst_78 : f32 to vector<16x128xf32>
    %226 = arith.cmpf oge, %224, %225 : vector<16x128xf32>
    %cst_79 = arith.constant 2.000000e-01 : f32
    %227 = vector.broadcast %cst_79 : f32 to vector<16x128xf32>
    %228 = arith.mulf %227, %224 : vector<16x128xf32>
    %229 = arith.select %226, %224, %228 : vector<16x128xi1>, vector<16x128xf32>
    %230 = arith.truncf %229 : vector<16x128xf32> to vector<16x128xbf16>
    %c672 = arith.constant 672 : index
    %c0_80 = arith.constant 0 : index
    %231 = vector.load %arg3[%c672, %c0_80] : memref<1184x256xbf16, #tpu.memory_space<vmem>>, vector<128x128xbf16>
    %cst_81 = arith.constant dense<0.000000e+00> : vector<16x128xf32>
    %232 = tpu.matmul %230, %231, %cst_81 {dimension_numbers = #tpu.dot_dimension_numbers<[1], [0], [0], [1], [0, 0, 1, 1], [], []>} : vector<16x128xbf16>, vector<128x128xbf16>, vector<16x128xf32> -> vector<16x128xf32>
    %c18 = arith.constant 18 : index
    %c0_82 = arith.constant 0 : index
    %233 = vector.load %arg2[%c18, %c0_82] : memref<32x256xf32, #tpu.memory_space<vmem>>, vector<1x128xf32>
    %234 = vector.broadcast %233 : vector<1x128xf32> to vector<16x128xf32>
    %235 = arith.addf %232, %234 : vector<16x128xf32>
    %c19 = arith.constant 19 : index
    %c0_83 = arith.constant 0 : index
    %236 = vector.load %arg2[%c19, %c0_83] : memref<32x256xf32, #tpu.memory_space<vmem>>, vector<1x128xf32>
    %c20 = arith.constant 20 : index
    %c0_84 = arith.constant 0 : index
    %237 = vector.load %arg2[%c20, %c0_84] : memref<32x256xf32, #tpu.memory_space<vmem>>, vector<1x128xf32>
    %cst_85 = arith.constant dense<0.000000e+00> : vector<16xf32>
    %238 = vector.multi_reduction <add>, %235, %cst_85 [1] : vector<16x128xf32> to vector<16xf32>
    %239 = vector.shape_cast %238 : vector<16xf32> to vector<16x1xf32>
    %240 = arith.mulf %235, %235 : vector<16x128xf32>
    %cst_86 = arith.constant dense<0.000000e+00> : vector<16xf32>
    %241 = vector.multi_reduction <add>, %240, %cst_86 [1] : vector<16x128xf32> to vector<16xf32>
    %242 = vector.shape_cast %241 : vector<16xf32> to vector<16x1xf32>
    %cst_87 = arith.constant 3.125000e-02 : f32
    %243 = vector.broadcast %cst_87 : f32 to vector<16x1xf32>
    %244 = arith.mulf %239, %243 : vector<16x1xf32>
    %cst_88 = arith.constant 3.125000e-02 : f32
    %245 = vector.broadcast %cst_88 : f32 to vector<16x1xf32>
    %246 = arith.mulf %242, %245 : vector<16x1xf32>
    %247 = arith.mulf %244, %244 : vector<16x1xf32>
    %248 = arith.subf %246, %247 : vector<16x1xf32>
    %cst_89 = arith.constant 0.000000e+00 : f32
    %249 = vector.broadcast %cst_89 : f32 to vector<16x1xf32>
    %250 = arith.maximumf %248, %249 : vector<16x1xf32>
    %251 = vector.broadcast %244 : vector<16x1xf32> to vector<16x128xf32>
    %252 = arith.subf %235, %251 : vector<16x128xf32>
    %cst_90 = arith.constant 9.99999974E-6 : f32
    %253 = vector.broadcast %cst_90 : f32 to vector<16x1xf32>
    %254 = arith.addf %250, %253 : vector<16x1xf32>
    %255 = math.rsqrt %254 : vector<16x1xf32>
    %256 = vector.broadcast %255 : vector<16x1xf32> to vector<16x128xf32>
    %257 = arith.mulf %252, %256 : vector<16x128xf32>
    %258 = vector.broadcast %236 : vector<1x128xf32> to vector<16x128xf32>
    %259 = arith.mulf %257, %258 : vector<16x128xf32>
    %260 = vector.broadcast %237 : vector<1x128xf32> to vector<16x128xf32>
    %261 = arith.addf %259, %260 : vector<16x128xf32>
    %262 = arith.addf %261, %198 : vector<16x128xf32>
    %cst_91 = arith.constant 0.000000e+00 : f32
    %263 = vector.broadcast %cst_91 : f32 to vector<16x128xf32>
    %264 = arith.cmpf oge, %262, %263 : vector<16x128xf32>
    %cst_92 = arith.constant 2.000000e-01 : f32
    %265 = vector.broadcast %cst_92 : f32 to vector<16x128xf32>
    %266 = arith.mulf %265, %262 : vector<16x128xf32>
    %267 = arith.select %264, %262, %266 : vector<16x128xi1>, vector<16x128xf32>
    %268 = arith.truncf %267 : vector<16x128xf32> to vector<16x128xbf16>
    %c800 = arith.constant 800 : index
    %c0_93 = arith.constant 0 : index
    %269 = vector.load %arg3[%c800, %c0_93] : memref<1184x256xbf16, #tpu.memory_space<vmem>>, vector<128x128xbf16>
    %cst_94 = arith.constant dense<0.000000e+00> : vector<16x128xf32>
    %270 = tpu.matmul %268, %269, %cst_94 {dimension_numbers = #tpu.dot_dimension_numbers<[1], [0], [0], [1], [0, 0, 1, 1], [], []>} : vector<16x128xbf16>, vector<128x128xbf16>, vector<16x128xf32> -> vector<16x128xf32>
    %c21 = arith.constant 21 : index
    %c0_95 = arith.constant 0 : index
    %271 = vector.load %arg2[%c21, %c0_95] : memref<32x256xf32, #tpu.memory_space<vmem>>, vector<1x128xf32>
    %272 = vector.broadcast %271 : vector<1x128xf32> to vector<16x128xf32>
    %273 = arith.addf %270, %272 : vector<16x128xf32>
    %274 = arith.addf %273, %267 : vector<16x128xf32>
    %275 = arith.truncf %274 : vector<16x128xf32> to vector<16x128xbf16>
    %c928 = arith.constant 928 : index
    %c0_96 = arith.constant 0 : index
    %276 = vector.load %arg3[%c928, %c0_96] : memref<1184x256xbf16, #tpu.memory_space<vmem>>, vector<128x128xbf16>
    %cst_97 = arith.constant dense<0.000000e+00> : vector<16x128xf32>
    %277 = tpu.matmul %275, %276, %cst_97 {dimension_numbers = #tpu.dot_dimension_numbers<[1], [0], [0], [1], [0, 0, 1, 1], [], []>} : vector<16x128xbf16>, vector<128x128xbf16>, vector<16x128xf32> -> vector<16x128xf32>
    %c22 = arith.constant 22 : index
    %c0_98 = arith.constant 0 : index
    %278 = vector.load %arg2[%c22, %c0_98] : memref<32x256xf32, #tpu.memory_space<vmem>>, vector<1x128xf32>
    %279 = vector.broadcast %278 : vector<1x128xf32> to vector<16x128xf32>
    %280 = arith.addf %277, %279 : vector<16x128xf32>
    %c23 = arith.constant 23 : index
    %c0_99 = arith.constant 0 : index
    %281 = vector.load %arg2[%c23, %c0_99] : memref<32x256xf32, #tpu.memory_space<vmem>>, vector<1x128xf32>
    %c24 = arith.constant 24 : index
    %c0_100 = arith.constant 0 : index
    %282 = vector.load %arg2[%c24, %c0_100] : memref<32x256xf32, #tpu.memory_space<vmem>>, vector<1x128xf32>
    %cst_101 = arith.constant dense<0.000000e+00> : vector<16xf32>
    %283 = vector.multi_reduction <add>, %280, %cst_101 [1] : vector<16x128xf32> to vector<16xf32>
    %284 = vector.shape_cast %283 : vector<16xf32> to vector<16x1xf32>
    %285 = arith.mulf %280, %280 : vector<16x128xf32>
    %cst_102 = arith.constant dense<0.000000e+00> : vector<16xf32>
    %286 = vector.multi_reduction <add>, %285, %cst_102 [1] : vector<16x128xf32> to vector<16xf32>
    %287 = vector.shape_cast %286 : vector<16xf32> to vector<16x1xf32>
    %cst_103 = arith.constant 6.250000e-02 : f32
    %288 = vector.broadcast %cst_103 : f32 to vector<16x1xf32>
    %289 = arith.mulf %284, %288 : vector<16x1xf32>
    %cst_104 = arith.constant 6.250000e-02 : f32
    %290 = vector.broadcast %cst_104 : f32 to vector<16x1xf32>
    %291 = arith.mulf %287, %290 : vector<16x1xf32>
    %292 = arith.mulf %289, %289 : vector<16x1xf32>
    %293 = arith.subf %291, %292 : vector<16x1xf32>
    %cst_105 = arith.constant 0.000000e+00 : f32
    %294 = vector.broadcast %cst_105 : f32 to vector<16x1xf32>
    %295 = arith.maximumf %293, %294 : vector<16x1xf32>
    %296 = vector.broadcast %289 : vector<16x1xf32> to vector<16x128xf32>
    %297 = arith.subf %280, %296 : vector<16x128xf32>
    %cst_106 = arith.constant 9.99999974E-6 : f32
    %298 = vector.broadcast %cst_106 : f32 to vector<16x1xf32>
    %299 = arith.addf %295, %298 : vector<16x1xf32>
    %300 = math.rsqrt %299 : vector<16x1xf32>
    %301 = vector.broadcast %300 : vector<16x1xf32> to vector<16x128xf32>
    %302 = arith.mulf %297, %301 : vector<16x128xf32>
    %303 = vector.broadcast %281 : vector<1x128xf32> to vector<16x128xf32>
    %304 = arith.mulf %302, %303 : vector<16x128xf32>
    %305 = vector.broadcast %282 : vector<1x128xf32> to vector<16x128xf32>
    %306 = arith.addf %304, %305 : vector<16x128xf32>
    %cst_107 = arith.constant 0.000000e+00 : f32
    %307 = vector.broadcast %cst_107 : f32 to vector<16x128xf32>
    %308 = arith.cmpf oge, %306, %307 : vector<16x128xf32>
    %cst_108 = arith.constant 2.000000e-01 : f32
    %309 = vector.broadcast %cst_108 : f32 to vector<16x128xf32>
    %310 = arith.mulf %309, %306 : vector<16x128xf32>
    %311 = arith.select %308, %306, %310 : vector<16x128xi1>, vector<16x128xf32>
    %312 = arith.truncf %311 : vector<16x128xf32> to vector<16x128xbf16>
    %c1056 = arith.constant 1056 : index
    %c0_109 = arith.constant 0 : index
    %313 = vector.load %arg3[%c1056, %c0_109] : memref<1184x256xbf16, #tpu.memory_space<vmem>>, vector<128x128xbf16>
    %cst_110 = arith.constant dense<0.000000e+00> : vector<16x128xf32>
    %314 = tpu.matmul %312, %313, %cst_110 {dimension_numbers = #tpu.dot_dimension_numbers<[1], [0], [0], [1], [0, 0, 1, 1], [], []>} : vector<16x128xbf16>, vector<128x128xbf16>, vector<16x128xf32> -> vector<16x128xf32>
    %c25 = arith.constant 25 : index
    %c0_111 = arith.constant 0 : index
    %315 = vector.load %arg2[%c25, %c0_111] : memref<32x256xf32, #tpu.memory_space<vmem>>, vector<1x128xf32>
    %316 = vector.broadcast %315 : vector<1x128xf32> to vector<16x128xf32>
    %317 = arith.addf %314, %316 : vector<16x128xf32>
    %c0_112 = arith.constant 0 : index
    %c0_113 = arith.constant 0 : index
    %318 = vector.load %arg4[%c0_112, %c0_113] : memref<16x128xf32, #tpu.memory_space<vmem>>, vector<16x128xf32>
    tpu.vector_store %arg4[%c0_112, %c0_113], %317 {strides = array<i32>} : memref<16x128xf32, #tpu.memory_space<vmem>>, vector<16x128xf32>,
    return
  }
  func.func @transform_0(%arg0: i32) -> (i32, i32) {
    %c0_i32 = arith.constant 0 : i32
    %c0_i32_0 = arith.constant 0 : i32
    return %arg0, %c0_i32 : i32, i32
  }
  func.func @transform_1(%arg0: i32) -> (i32, i32) {
    %c0_i32 = arith.constant 0 : i32
    %c0_i32_0 = arith.constant 0 : i32
    %c0_i32_1 = arith.constant 0 : i32
    return %c0_i32, %c0_i32_0 : i32, i32
  }
  func.func @transform_2(%arg0: i32) -> (i32, i32) {
    %c0_i32 = arith.constant 0 : i32
    %c0_i32_0 = arith.constant 0 : i32
    %c0_i32_1 = arith.constant 0 : i32
    return %c0_i32, %c0_i32_0 : i32, i32
  }
  func.func @transform_3(%arg0: i32) -> (i32, i32) {
    %c0_i32 = arith.constant 0 : i32
    %c0_i32_0 = arith.constant 0 : i32
    return %arg0, %c0_i32 : i32, i32
  }
}

</mosaic_0001>

<llo_original>
// kernel: tpu_custom_call.1
$region0: #{tpu_custom_call.1}
  #allocation0 [shape = 'u32[]', space=smem, size = 0x4, offset = 0x4, fixed_abs, tag = 'smem constant byte address 0x4 - core index']
  #allocation1 [shape = 'u32[144,128]{1,0:T(1,128)}', space=vmem, size = 0x12000, scoped, tag = 'internal scratch']
  %s0 = inlined_call_operand.hbm [shape: bf16[16,32], index: 0, kind: input, shape index: {}]
  %s1 = inlined_call_operand.hbm [shape: f32[32,256], index: 1, kind: input, shape index: {}]
  %s2 = inlined_call_operand.hbm [shape: bf16[1184,256], index: 2, kind: input, shape index: {}]
  %s3 = inlined_call_operand.hbm [shape: f32[16,128], index: 3, kind: output, shape index: {}]
  %s4 = sld [smem:[#allocation0]]
  $region34: #{tpu_custom_call.1} parent=0
    _
  %s6 = ssub.s32 1, %s4
  %s7 = scalar_select 0, %s6, %s4
  $region1: #{tpu_custom_call.1} parent=0
    #allocation2 [shape = 'u8[4096]{0}', space=vmem, size = 0x1000, scoped, tag = 'input window, operand 0, single buffered']
    #allocation3 [shape = 's32[1]{0}', space=sflag, size = 0x4, scoped, tag = 'scoped memory for tpu_custom_call.1']
    #allocation4 [shape = 's32[1]{0}', space=sflag, size = 0x4, scoped, tag = 'scoped memory for tpu_custom_call.1']
    #allocation5 [shape = 'u8[32768]{0}', space=vmem, size = 0x8000, scoped, tag = 'input window, operand 1, single buffered']
    #allocation6 [shape = 's32[1]{0}', space=sflag, size = 0x4, scoped, tag = 'scoped memory for tpu_custom_call.1']
    #allocation7 [shape = 'u8[606208]{0}', space=vmem, size = 0x94000, scoped, tag = 'input window, operand 2, single buffered']
    #allocation8 [shape = 'u8[8192]{0}', space=vmem, size = 0x2000, scoped, tag = 'output window, operand 0, single buffered']
    %8 = vsyncpa [#allocation3], 0
    %9 = vsyncpa [#allocation6], 0
    %10 = vsyncpa [#allocation4], 0
    // Predicated region
    $region2: #{tpu_custom_call.1} parent=1 // pred_check
      _
    $region3: #{tpu_custom_call.1} parent=1 // pred_check_branch
      %12 = sbr.rel (0) target = $region5
    $region4: #{tpu_custom_call.1} parent=1 // pred_region
      %s14 = ssub.s32 128, 128
      %15 = vsyncadd [#allocation3], %s14
      %s16 = sshll.u32 [#allocation2], 4
      %s17 = int_to_ptr.vmem [resolvable:$true] %s16
      %22 = dma.hbm_to_vmem [thread:$0]  %s0, 128, %s17, [#allocation3], 64, 64, 4
    $region5: #{tpu_custom_call.1} parent=1 // pred_fallthru
      _
    // Predicated region
    $region6: #{tpu_custom_call.1} parent=1 // pred_check
      _
    $region7: #{tpu_custom_call.1} parent=1 // pred_check_branch
      %24 = sbr.rel (0) target = $region9
    $region8: #{tpu_custom_call.1} parent=1 // pred_region
      %s26 = ssub.s32 1024, 1024
      %27 = vsyncadd [#allocation6], %s26
      %s28 = sshll.u32 [#allocation5], 4
      %s29 = int_to_ptr.vmem [resolvable:$true] %s28
      %34 = dma.hbm_to_vmem [thread:$0]  %s1, 1024, %s29, [#allocation6], 256, 256, 16
    $region9: #{tpu_custom_call.1} parent=1 // pred_fallthru
      _
    // Predicated region
    $region10: #{tpu_custom_call.1} parent=1 // pred_check
      _
    $region11: #{tpu_custom_call.1} parent=1 // pred_check_branch
      %36 = sbr.rel (0) target = $region13
    $region12: #{tpu_custom_call.1} parent=1 // pred_region
      %s38 = ssub.s32 18944, 18944
      %39 = vsyncadd [#allocation6], %s38
      %s40 = sshll.u32 [#allocation7], 4
      %s41 = int_to_ptr.vmem [resolvable:$true] %s40
      %46 = dma.hbm_to_vmem [thread:$0]  %s2, 18944, %s41, [#allocation6], 128, 128, 8
    $region13: #{tpu_custom_call.1} parent=1 // pred_fallthru
      _
    // Predicated region
    $region14: #{tpu_custom_call.1} parent=1 // pred_check
      _
    $region15: #{tpu_custom_call.1} parent=1 // pred_check_branch
      %48 = sbr.rel (0) target = $region17
    $region16: #{tpu_custom_call.1} parent=1 // pred_region
      %49 = dma.done [#allocation3], 128
    $region17: #{tpu_custom_call.1} parent=1 // pred_fallthru
      _
    // Predicated region
    $region18: #{tpu_custom_call.1} parent=1 // pred_check
      _
    $region19: #{tpu_custom_call.1} parent=1 // pred_check_branch
      %51 = sbr.rel (0) target = $region21
    $region20: #{tpu_custom_call.1} parent=1 // pred_region
      %52 = dma.done [#allocation6], 1024
    $region21: #{tpu_custom_call.1} parent=1 // pred_fallthru
      _
    // Predicated region
    $region22: #{tpu_custom_call.1} parent=1 // pred_check
      _
    $region23: #{tpu_custom_call.1} parent=1 // pred_check_branch
      %54 = sbr.rel (0) target = $region25
    $region24: #{tpu_custom_call.1} parent=1 // pred_region
      %55 = dma.done [#allocation6], 18944
    $region25: #{tpu_custom_call.1} parent=1 // pred_fallthru
      _
    %v57 = vld [vmem:[#allocation2] sm:$0xf]
    %v58 = vld [vmem:[#allocation2 + $0x4] sm:$0xf]
    %v59 = vld [vmem:[#allocation7] sm:$0xf]
    %v60 = vld [vmem:[#allocation7 + $0x8] sm:$0xf]
    %v61 = vld [vmem:[#allocation7 + $0x10] sm:$0xf]
    %v62 = vld [vmem:[#allocation7 + $0x18] sm:$0xf]
    %v63 = vld [vmem:[#allocation5] ss:$0 sm:$0xff]
    %v66 = vunpack.c.l.b16 %v57
    %v67 = vunpack.c.l.b16 %v58
    %v68 = vpack.c.b16 %v67, %v66
    %v73 = vunpack.c.l.b16 %v59
    %v74 = vunpack.c.l.b16 %v60
    %v75 = vunpack.c.l.b16 %v61
    %v76 = vunpack.c.l.b16 %v62
    %v77 = vpack.c.b16 %v74, %v73
    %v78 = vpack.c.b16 %v76, %v75
    %vm81 = vcmask 261120
    %v83 = vsel %vm81, %v68, 0
    %85 = vmatprep.subr.bf16.mxu0 0
    %86 = vmatpush1.bf16.msra.mxu0 %v77
    %87 = vmatprep.subr.bf16.mxu0 0
    %88 = vmatpush1.bf16.msra.mxu0 %v78
    %89 = vmatprep.subr.bf16.mxu0 0
    %90 = vmatpush1.bf16.msra.mxu0 0
    %91 = vmatprep.subr.bf16.mxu0 0
    %92 = vmatpush1.bf16.msra.mxu0 0
    %93 = vmatprep.subr.bf16.mxu0 0
    %94 = vmatpush1.bf16.msra.mxu0 0
    %95 = vmatprep.subr.bf16.mxu0 0
    %96 = vmatpush1.bf16.msra.mxu0 0
    %97 = vmatprep.subr.bf16.mxu0 0
    %98 = vmatpush1.bf16.msra.mxu0 0
    %99 = vmatprep.subr.bf16.mxu0 0
    %100 = vmatpush1.bf16.msra.mxu0 0
    %101 = vmatprep.subr.bf16.mxu0 0
    %102 = vmatpush1.bf16.msra.mxu0 0
    %103 = vmatprep.subr.bf16.mxu0 0
    %104 = vmatpush1.bf16.msra.mxu0 0
    %105 = vmatprep.subr.bf16.mxu0 0
    %106 = vmatpush1.bf16.msra.mxu0 0
    %107 = vmatprep.subr.bf16.mxu0 0
    %108 = vmatpush1.bf16.msra.mxu0 0
    %109 = vmatprep.subr.bf16.mxu0 0
    %110 = vmatpush1.bf16.msra.mxu0 0
    %111 = vmatprep.subr.bf16.mxu0 0
    %112 = vmatpush1.bf16.msra.mxu0 0
    %113 = vmatprep.subr.bf16.mxu0 0
    %114 = vmatpush1.bf16.msra.mxu0 0
    %115 = vmatprep.subr.bf16.mxu0 0
    %116 = vmatpush1.bf16.msra.mxu0 0
    %117 = vmatprep.mubr.bf16.mxu0 0
    %118 = vmatmul.mubr.bf16.gmra.mrb[0].mxu0 %v83
    %v119 = vpop.f32.mrb[0].mxu0
    %v120 = vadd.f32 %v63, %v119
    %v121 = vpop.f32.mrb[0].mxu0
    %v122 = vpop.f32.mrb[0].mxu0
    %v123 = vadd.f32 %v63, %v122
    %v124 = vpop.f32.mrb[0].mxu0
    %125 = vdwg.mxu0
    %v126 = vld [vmem:[#allocation5 + $0x1] ss:$0 sm:$0xff]
    %v127 = vld [vmem:[#allocation5 + $0x2] ss:$0 sm:$0xff]
    %128 = vadd.xlane.f32.xlu0 %v120
    %v129 = vpop.xlane.xlu0 %128
    %130 = vadd.xlane.f32.xlu0 %v123
    %v131 = vpop.xlane.xlu0 %130
    %v132 = vmul.f32 %v120, %v120
    %v133 = vmul.f32 %v123, %v123
    %134 = vadd.xlane.f32.xlu0 %v132
    %v135 = vpop.xlane.xlu0 %134
    %136 = vadd.xlane.f32.xlu0 %v133
    %v137 = vpop.xlane.xlu0 %136
    %v138 = vmul.f32 %v129, 0.015625
    %v139 = vmul.f32 %v131, 0.015625
    %v140 = vmul.f32 %v135, 0.015625
    %v141 = vmul.f32 %v137, 0.015625
    %v142 = vmul.f32 %v138, %v138
    %v143 = vmul.f32 %v139, %v139
    %v144 = vsub.f32 %v140, %v142
    %v145 = vsub.f32 %v141, %v143
    %v146 = vmax.f32 %v144, 0.0
    %v147 = vmax.f32 %v145, 0.0
    %v148 = vsub.f32 %v120, %v138
    %v149 = vsub.f32 %v123, %v139
    %v150 = vadd.f32 %v146, 1e-05
    %v151 = vadd.f32 %v147, 1e-05
    %v152 = vrsqrt.pop %v150
    %v153 = vrsqrt.pop %v151
    %v154 = vmul.f32 %v148, %v152
    %v155 = vmul.f32 %v149, %v153
    %v156 = vmul.f32 %v154, %v126
    %v157 = vmul.f32 %v155, %v126
    %v158 = vadd.f32 %v156, %v127
    %v159 = vadd.f32 %v157, %v127
    %vm160 = vcmp.ge.f32.partialorder %v158, 0.0
    %vm161 = vcmp.ge.f32.partialorder %v159, 0.0
    %v162 = vmul.f32 %v158, 0.2
    %v163 = vmul.f32 %v159, 0.2
    %v164 = vsel %vm160, %v158, %v162
    %v165 = vsel %vm161, %v159, %v163
    %v166 = vpack.c.bf16 %v165, %v164
    %v167 = vld [vmem:[#allocation7 + $0x20] sm:$0xff]
    %v168 = vld [vmem:[#allocation7 + $0x28] sm:$0xff]
    %v169 = vld [vmem:[#allocation7 + $0x30] sm:$0xff]
    %v170 = vld [vmem:[#allocation7 + $0x38] sm:$0xff]
    %v171 = vld [vmem:[#allocation7 + $0x40] sm:$0xff]
    %v172 = vld [vmem:[#allocation7 + $0x48] sm:$0xff]
    %v173 = vld [vmem:[#allocation7 + $0x50] sm:$0xff]
    %v174 = vld [vmem:[#allocation7 + $0x58] sm:$0xff]
    %v175 = vld [vmem:[#allocation7 + $0x60] sm:$0xff]
    %v176 = vld [vmem:[#allocation7 + $0x68] sm:$0xff]
    %v177 = vld [vmem:[#allocation7 + $0x70] sm:$0xff]
    %v178 = vld [vmem:[#allocation7 + $0x78] sm:$0xff]
    %v179 = vld [vmem:[#allocation7 + $0x80] sm:$0xff]
    %v180 = vld [vmem:[#allocation7 + $0x88] sm:$0xff]
    %v181 = vld [vmem:[#allocation7 + $0x90] sm:$0xff]
    %v182 = vld [vmem:[#allocation7 + $0x98] sm:$0xff]
    %s183 = scalar_lea.vmem [#allocation5], 3
    %v184 = vld [vmem:[%s183] ss:$8 sm:$0x3]
    %v186 = vlaneseq
    %v187 = vshrl.u32 %v186, 7
    %v188 = vsub.s32 0, %v187
    %v189 = vrot.slane %v184, %v188
    %v190 = vlaneseq
    %v191 = vshrl.u32 %v190, 7
    %v192 = vsub.s32 1, %v191
    %v193 = vrot.slane %v184, %v192
    %v212 = vunpack.c.l.b16 %v167
    %v213 = vunpack.c.h.b16 %v167
    %v214 = vunpack.c.l.b16 %v168
    %v215 = vunpack.c.h.b16 %v168
    %v216 = vunpack.c.l.b16 %v169
    %v217 = vunpack.c.h.b16 %v169
    %v218 = vunpack.c.l.b16 %v170
    %v219 = vunpack.c.h.b16 %v170
    %v220 = vunpack.c.l.b16 %v171
    %v221 = vunpack.c.h.b16 %v171
    %v222 = vunpack.c.l.b16 %v172
    %v223 = vunpack.c.h.b16 %v172
    %v224 = vunpack.c.l.b16 %v173
    %v225 = vunpack.c.h.b16 %v173
    %v226 = vunpack.c.l.b16 %v174
    %v227 = vunpack.c.h.b16 %v174
    %v228 = vunpack.c.l.b16 %v175
    %v229 = vunpack.c.h.b16 %v175
    %v230 = vunpack.c.l.b16 %v176
    %v231 = vunpack.c.h.b16 %v176
    %v232 = vunpack.c.l.b16 %v177
    %v233 = vunpack.c.h.b16 %v177
    %v234 = vunpack.c.l.b16 %v178
    %v235 = vunpack.c.h.b16 %v178
    %v236 = vunpack.c.l.b16 %v179
    %v237 = vunpack.c.h.b16 %v179
    %v238 = vunpack.c.l.b16 %v180
    %v239 = vunpack.c.h.b16 %v180
    %v240 = vunpack.c.l.b16 %v181
    %v241 = vunpack.c.h.b16 %v181
    %v242 = vunpack.c.l.b16 %v182
    %v243 = vunpack.c.h.b16 %v182
    %v244 = vpack.c.b16 %v214, %v212
    %v245 = vpack.c.b16 %v215, %v213
    %v246 = vpack.c.b16 %v218, %v216
    %v247 = vpack.c.b16 %v219, %v217
    %v248 = vpack.c.b16 %v222, %v220
    %v249 = vpack.c.b16 %v223, %v221
    %v250 = vpack.c.b16 %v226, %v224
    %v251 = vpack.c.b16 %v227, %v225
    %v252 = vpack.c.b16 %v230, %v228
    %v253 = vpack.c.b16 %v231, %v229
    %v254 = vpack.c.b16 %v234, %v232
    %v255 = vpack.c.b16 %v235, %v233
    %v256 = vpack.c.b16 %v238, %v236
    %v257 = vpack.c.b16 %v239, %v237
    %v258 = vpack.c.b16 %v242, %v240
    %v259 = vpack.c.b16 %v243, %v241
    %276 = vmatprep.subr.bf16.mxu0 %v245
    %277 = vmatpush1.bf16.msra.mxu0 %v244
    %278 = vmatprep.subr.bf16.mxu0 %v247
    %279 = vmatpush1.bf16.msra.mxu0 %v246
    %280 = vmatprep.subr.bf16.mxu0 %v249
    %281 = vmatpush1.bf16.msra.mxu0 %v248
    %282 = vmatprep.subr.bf16.mxu0 %v251
    %283 = vmatpush1.bf16.msra.mxu0 %v250
    %284 = vmatprep.subr.bf16.mxu0 %v253
    %285 = vmatpush1.bf16.msra.mxu0 %v252
    %286 = vmatprep.subr.bf16.mxu0 %v255
    %287 = vmatpush1.bf16.msra.mxu0 %v254
    %288 = vmatprep.subr.bf16.mxu0 %v257
    %289 = vmatpush1.bf16.msra.mxu0 %v256
    %290 = vmatprep.subr.bf16.mxu0 %v259
    %291 = vmatpush1.bf16.msra.mxu0 %v258
    %292 = vmatprep.subr.bf16.mxu0 0
    %293 = vmatpush1.bf16.msra.mxu0 0
    %294 = vmatprep.subr.bf16.mxu0 0
    %295 = vmatpush1.bf16.msra.mxu0 0
    %296 = vmatprep.subr.bf16.mxu0 0
    %297 = vmatpush1.bf16.msra.mxu0 0
    %298 = vmatprep.subr.bf16.mxu0 0
    %299 = vmatpush1.bf16.msra.mxu0 0
    %300 = vmatprep.subr.bf16.mxu0 0
    %301 = vmatpush1.bf16.msra.mxu0 0
    %302 = vmatprep.subr.bf16.mxu0 0
    %303 = vmatpush1.bf16.msra.mxu0 0
    %304 = vmatprep.subr.bf16.mxu0 0
    %305 = vmatpush1.bf16.msra.mxu0 0
    %306 = vmatprep.subr.bf16.mxu0 0
    %307 = vmatpush1.bf16.msra.mxu0 0
    %308 = vmatprep.mubr.bf16.mxu0 0
    %309 = vmatmul.mubr.bf16.gmra.mrb[0].mxu0 %v166
    %v310 = vpop.f32.mrb[0].mxu0
    %v311 = vadd.f32 %v189, %v310
    %v312 = vpop.f32.mrb[0].mxu0
    %v313 = vadd.f32 %v193, %v312
    %v314 = vpop.f32.mrb[0].mxu0
    %v315 = vadd.f32 %v189, %v314
    %v316 = vpop.f32.mrb[0].mxu0
    %v317 = vadd.f32 %v193, %v316
    %318 = vdwg.mxu0
    %v319 = vld [vmem:[#allocation5 + $0x4] ss:$0 sm:$0xff]
    %v320 = vld [vmem:[#allocation5 + $0x5] ss:$0 sm:$0xff]
    %321 = vadd.xlane.f32.xlu0 %v311
    %v322 = vpop.xlane.xlu0 %321
    %323 = vadd.xlane.f32.xlu0 %v315
    %v324 = vpop.xlane.xlu0 %323
    %v325 = vmul.f32 %v311, %v311
    %v326 = vmul.f32 %v315, %v315
    %327 = vadd.xlane.f32.xlu0 %v325
    %v328 = vpop.xlane.xlu0 %327
    %329 = vadd.xlane.f32.xlu0 %v326
    %v330 = vpop.xlane.xlu0 %329
    %v331 = vmul.f32 %v322, 0.0078125
    %v332 = vmul.f32 %v324, 0.0078125
    %v333 = vmul.f32 %v328, 0.0078125
    %v334 = vmul.f32 %v330, 0.0078125
    %v335 = vmul.f32 %v331, %v331
    %v336 = vmul.f32 %v332, %v332
    %v337 = vsub.f32 %v333, %v335
    %v338 = vsub.f32 %v334, %v336
    %v339 = vmax.f32 %v337, 0.0
    %v340 = vmax.f32 %v338, 0.0
    %v341 = vsub.f32 %v311, %v331
    %v342 = vsub.f32 %v315, %v332
    %v343 = vadd.f32 %v339, 1e-05
    %v344 = vadd.f32 %v340, 1e-05
    %v345 = vrsqrt.pop %v343
    %v346 = vrsqrt.pop %v344
    %v347 = vmul.f32 %v341, %v345
    %v348 = vmul.f32 %v342, %v346
    %v349 = vmul.f32 %v347, %v319
    %v350 = vmul.f32 %v348, %v319
    %v351 = vadd.f32 %v349, %v320
    %v352 = vadd.f32 %v350, %v320
    %vm353 = vcmp.ge.f32.partialorder %v351, 0.0
    %vm354 = vcmp.ge.f32.partialorder %v352, 0.0
    %v355 = vmul.f32 %v351, 0.2
    %v356 = vmul.f32 %v352, 0.2
    %v357 = vsel %vm353, %v351, %v355
    %v358 = vsel %vm354, %v352, %v356
    %v359 = vpack.c.bf16 %v358, %v357
    %v360 = vld [vmem:[#allocation7 + $0xa0] sm:$0xf]
    %v361 = vld [vmem:[#allocation7 + $0xa8] sm:$0xf]
    %v362 = vld [vmem:[#allocation7 + $0xb0] sm:$0xf]
    %v363 = vld [vmem:[#allocation7 + $0xb8] sm:$0xf]
    %v364 = vld [vmem:[#allocation7 + $0xc0] sm:$0xf]
    %v365 = vld [vmem:[#allocation7 + $0xc8] sm:$0xf]
    %v366 = vld [vmem:[#allocation7 + $0xd0] sm:$0xf]
    %v367 = vld [vmem:[#allocation7 + $0xd8] sm:$0xf]
    %v368 = vld [vmem:[#allocation7 + $0xe0] sm:$0xf]
    %v369 = vld [vmem:[#allocation7 + $0xe8] sm:$0xf]
    %v370 = vld [vmem:[#allocation7 + $0xf0] sm:$0xf]
    %v371 = vld [vmem:[#allocation7 + $0xf8] sm:$0xf]
    %v372 = vld [vmem:[#allocation7 + $0x100] sm:$0xf]
    %v373 = vld [vmem:[#allocation7 + $0x108] sm:$0xf]
    %v374 = vld [vmem:[#allocation7 + $0x110] sm:$0xf]
    %v375 = vld [vmem:[#allocation7 + $0x118] sm:$0xf]
    %v376 = vld [vmem:[#allocation5 + $0x6] ss:$0 sm:$0xff]
    %v393 = vunpack.c.l.b16 %v360
    %v394 = vunpack.c.l.b16 %v361
    %v395 = vunpack.c.l.b16 %v362
    %v396 = vunpack.c.l.b16 %v363
    %v397 = vunpack.c.l.b16 %v364
    %v398 = vunpack.c.l.b16 %v365
    %v399 = vunpack.c.l.b16 %v366
    %v400 = vunpack.c.l.b16 %v367
    %v401 = vunpack.c.l.b16 %v368
    %v402 = vunpack.c.l.b16 %v369
    %v403 = vunpack.c.l.b16 %v370
    %v404 = vunpack.c.l.b16 %v371
    %v405 = vunpack.c.l.b16 %v372
    %v406 = vunpack.c.l.b16 %v373
    %v407 = vunpack.c.l.b16 %v374
    %v408 = vunpack.c.l.b16 %v375
    %v409 = vpack.c.b16 %v394, %v393
    %v410 = vpack.c.b16 %v396, %v395
    %v411 = vpack.c.b16 %v398, %v397
    %v412 = vpack.c.b16 %v400, %v399
    %v413 = vpack.c.b16 %v402, %v401
    %v414 = vpack.c.b16 %v404, %v403
    %v415 = vpack.c.b16 %v406, %v405
    %v416 = vpack.c.b16 %v408, %v407
    %425 = vmatprep.subr.bf16.mxu0 0
    %426 = vmatpush1.bf16.msra.mxu0 %v409
    %427 = vmatprep.subr.bf16.mxu0 0
    %428 = vmatpush1.bf16.msra.mxu0 %v410
    %429 = vmatprep.subr.bf16.mxu0 0
    %430 = vmatpush1.bf16.msra.mxu0 %v411
    %431 = vmatprep.subr.bf16.mxu0 0
    %432 = vmatpush1.bf16.msra.mxu0 %v412
    %433 = vmatprep.subr.bf16.mxu0 0
    %434 = vmatpush1.bf16.msra.mxu0 %v413
    %435 = vmatprep.subr.bf16.mxu0 0
    %436 = vmatpush1.bf16.msra.mxu0 %v414
    %437 = vmatprep.subr.bf16.mxu0 0
    %438 = vmatpush1.bf16.msra.mxu0 %v415
    %439 = vmatprep.subr.bf16.mxu0 0
    %440 = vmatpush1.bf16.msra.mxu0 %v416
    %441 = vmatprep.subr.bf16.mxu0 0
    %442 = vmatpush1.bf16.msra.mxu0 0
    %443 = vmatprep.subr.bf16.mxu0 0
    %444 = vmatpush1.bf16.msra.mxu0 0
    %445 = vmatprep.subr.bf16.mxu0 0
    %446 = vmatpush1.bf16.msra.mxu0 0
    %447 = vmatprep.subr.bf16.mxu0 0
    %448 = vmatpush1.bf16.msra.mxu0 0
    %449 = vmatprep.subr.bf16.mxu0 0
    %450 = vmatpush1.bf16.msra.mxu0 0
    %451 = vmatprep.subr.bf16.mxu0 0
    %452 = vmatpush1.bf16.msra.mxu0 0
    %453 = vmatprep.subr.bf16.mxu0 0
    %454 = vmatpush1.bf16.msra.mxu0 0
    %455 = vmatprep.subr.bf16.mxu0 0
    %456 = vmatpush1.bf16.msra.mxu0 0
    %457 = vmatprep.mubr.bf16.mxu0 0
    %458 = vmatmul.mubr.bf16.gmra.mrb[0].mxu0 %v359
    %v459 = vpop.f32.mrb[0].mxu0
    %v460 = vadd.f32 %v376, %v459
    %v461 = vpop.f32.mrb[0].mxu0
    %v462 = vpop.f32.mrb[0].mxu0
    %v463 = vadd.f32 %v376, %v462
    %v464 = vpop.f32.mrb[0].mxu0
    %465 = vdwg.mxu0
    %v466 = vld [vmem:[#allocation5 + $0x7] ss:$0 sm:$0xff]
    %v467 = vld [vmem:[#allocation5 + $0x10] ss:$0 sm:$0xff]
    %468 = vadd.xlane.f32.xlu0 %v460
    %v469 = vpop.xlane.xlu0 %468
    %470 = vadd.xlane.f32.xlu0 %v463
    %v471 = vpop.xlane.xlu0 %470
    %v472 = vmul.f32 %v460, %v460
    %v473 = vmul.f32 %v463, %v463
    %474 = vadd.xlane.f32.xlu0 %v472
    %v475 = vpop.xlane.xlu0 %474
    %476 = vadd.xlane.f32.xlu0 %v473
    %v477 = vpop.xlane.xlu0 %476
    %v478 = vmul.f32 %v469, 0.0078125
    %v479 = vmul.f32 %v471, 0.0078125
    %v480 = vmul.f32 %v475, 0.0078125
    %v481 = vmul.f32 %v477, 0.0078125
    %v482 = vmul.f32 %v478, %v478
    %v483 = vmul.f32 %v479, %v479
    %v484 = vsub.f32 %v480, %v482
    %v485 = vsub.f32 %v481, %v483
    %v486 = vmax.f32 %v484, 0.0
    %v487 = vmax.f32 %v485, 0.0
    %v488 = vsub.f32 %v460, %v478
    %v489 = vsub.f32 %v463, %v479
    %v490 = vadd.f32 %v486, 1e-05
    %v491 = vadd.f32 %v487, 1e-05
    %v492 = vrsqrt.pop %v490
    %v493 = vrsqrt.pop %v491
    %v494 = vmul.f32 %v488, %v492
    %v495 = vmul.f32 %v489, %v493
    %v496 = vmul.f32 %v494, %v466
    %v497 = vmul.f32 %v495, %v466
    %v498 = vadd.f32 %v496, %v467
    %v499 = vadd.f32 %v497, %v467
    %v500 = vadd.f32 %v498, %v313
    %v501 = vadd.f32 %v499, %v317
    %vm502 = vcmp.ge.f32.partialorder %v500, 0.0
    %vm503 = vcmp.ge.f32.partialorder %v501, 0.0
    %v504 = vmul.f32 %v500, 0.2
    %v505 = vmul.f32 %v501, 0.2
    %v506 = vsel %vm502, %v500, %v504
    %v507 = vsel %vm503, %v501, %v505
    %v508 = vpack.c.bf16 %v507, %v506
    %v509 = vld [vmem:[#allocation7 + $0x120] sm:$0xff]
    %v510 = vld [vmem:[#allocation7 + $0x128] sm:$0xff]
    %v511 = vld [vmem:[#allocation7 + $0x130] sm:$0xff]
    %v512 = vld [vmem:[#allocation7 + $0x138] sm:$0xff]
    %v513 = vld [vmem:[#allocation7 + $0x140] sm:$0xff]
    %v514 = vld [vmem:[#allocation7 + $0x148] sm:$0xff]
    %v515 = vld [vmem:[#allocation7 + $0x150] sm:$0xff]
    %v516 = vld [vmem:[#allocation7 + $0x158] sm:$0xff]
    %v517 = vld [vmem:[#allocation7 + $0x160] sm:$0xff]
    %v518 = vld [vmem:[#allocation7 + $0x168] sm:$0xff]
    %v519 = vld [vmem:[#allocation7 + $0x170] sm:$0xff]
    %v520 = vld [vmem:[#allocation7 + $0x178] sm:$0xff]
    %v521 = vld [vmem:[#allocation7 + $0x180] sm:$0xff]
    %v522 = vld [vmem:[#allocation7 + $0x188] sm:$0xff]
    %v523 = vld [vmem:[#allocation7 + $0x190] sm:$0xff]
    %v524 = vld [vmem:[#allocation7 + $0x198] sm:$0xff]
    %s525 = scalar_lea.vmem [#allocation5], 17
    %v526 = vld [vmem:[%s525] ss:$8 sm:$0x3]
    %v528 = vlaneseq
    %v529 = vshrl.u32 %v528, 7
    %v530 = vsub.s32 0, %v529
    %v531 = vrot.slane %v526, %v530
    %v532 = vlaneseq
    %v533 = vshrl.u32 %v532, 7
    %v534 = vsub.s32 1, %v533
    %v535 = vrot.slane %v526, %v534
    %v554 = vunpack.c.l.b16 %v509
    %v555 = vunpack.c.h.b16 %v509
    %v556 = vunpack.c.l.b16 %v510
    %v557 = vunpack.c.h.b16 %v510
    %v558 = vunpack.c.l.b16 %v511
    %v559 = vunpack.c.h.b16 %v511
    %v560 = vunpack.c.l.b16 %v512
    %v561 = vunpack.c.h.b16 %v512
    %v562 = vunpack.c.l.b16 %v513
    %v563 = vunpack.c.h.b16 %v513
    %v564 = vunpack.c.l.b16 %v514
    %v565 = vunpack.c.h.b16 %v514
    %v566 = vunpack.c.l.b16 %v515
    %v567 = vunpack.c.h.b16 %v515
    %v568 = vunpack.c.l.b16 %v516
    %v569 = vunpack.c.h.b16 %v516
    %v570 = vunpack.c.l.b16 %v517
    %v571 = vunpack.c.h.b16 %v517
    %v572 = vunpack.c.l.b16 %v518
    %v573 = vunpack.c.h.b16 %v518
    %v574 = vunpack.c.l.b16 %v519
    %v575 = vunpack.c.h.b16 %v519
    %v576 = vunpack.c.l.b16 %v520
    %v577 = vunpack.c.h.b16 %v520
    %v578 = vunpack.c.l.b16 %v521
    %v579 = vunpack.c.h.b16 %v521
    %v580 = vunpack.c.l.b16 %v522
    %v581 = vunpack.c.h.b16 %v522
    %v582 = vunpack.c.l.b16 %v523
    %v583 = vunpack.c.h.b16 %v523
    %v584 = vunpack.c.l.b16 %v524
    %v585 = vunpack.c.h.b16 %v524
    %v586 = vpack.c.b16 %v556, %v554
    %v587 = vpack.c.b16 %v557, %v555
    %v588 = vpack.c.b16 %v560, %v558
    %v589 = vpack.c.b16 %v561, %v559
    %v590 = vpack.c.b16 %v564, %v562
    %v591 = vpack.c.b16 %v565, %v563
    %v592 = vpack.c.b16 %v568, %v566
    %v593 = vpack.c.b16 %v569, %v567
    %v594 = vpack.c.b16 %v572, %v570
    %v595 = vpack.c.b16 %v573, %v571
    %v596 = vpack.c.b16 %v576, %v574
    %v597 = vpack.c.b16 %v577, %v575
    %v598 = vpack.c.b16 %v580, %v578
    %v599 = vpack.c.b16 %v581, %v579
    %v600 = vpack.c.b16 %v584, %v582
    %v601 = vpack.c.b16 %v585, %v583
    %618 = vmatprep.subr.bf16.mxu0 %v587
    %619 = vmatpush1.bf16.msra.mxu0 %v586
    %620 = vmatprep.subr.bf16.mxu0 %v589
    %621 = vmatpush1.bf16.msra.mxu0 %v588
    %622 = vmatprep.subr.bf16.mxu0 %v591
    %623 = vmatpush1.bf16.msra.mxu0 %v590
    %624 = vmatprep.subr.bf16.mxu0 %v593
    %625 = vmatpush1.bf16.msra.mxu0 %v592
    %626 = vmatprep.subr.bf16.mxu0 %v595
    %627 = vmatpush1.bf16.msra.mxu0 %v594
    %628 = vmatprep.subr.bf16.mxu0 %v597
    %629 = vmatpush1.bf16.msra.mxu0 %v596
    %630 = vmatprep.subr.bf16.mxu0 %v599
    %631 = vmatpush1.bf16.msra.mxu0 %v598
    %632 = vmatprep.subr.bf16.mxu0 %v601
    %633 = vmatpush1.bf16.msra.mxu0 %v600
    %634 = vmatprep.subr.bf16.mxu0 0
    %635 = vmatpush1.bf16.msra.mxu0 0
    %636 = vmatprep.subr.bf16.mxu0 0
    %637 = vmatpush1.bf16.msra.mxu0 0
    %638 = vmatprep.subr.bf16.mxu0 0
    %639 = vmatpush1.bf16.msra.mxu0 0
    %640 = vmatprep.subr.bf16.mxu0 0
    %641 = vmatpush1.bf16.msra.mxu0 0
    %642 = vmatprep.subr.bf16.mxu0 0
    %643 = vmatpush1.bf16.msra.mxu0 0
    %644 = vmatprep.subr.bf16.mxu0 0
    %645 = vmatpush1.bf16.msra.mxu0 0
    %646 = vmatprep.subr.bf16.mxu0 0
    %647 = vmatpush1.bf16.msra.mxu0 0
    %648 = vmatprep.subr.bf16.mxu0 0
    %649 = vmatpush1.bf16.msra.mxu0 0
    %650 = vmatprep.mubr.bf16.mxu0 0
    %651 = vmatmul.mubr.bf16.gmra.mrb[0].mxu0 %v508
    %v652 = vpop.f32.mrb[0].mxu0
    %v653 = vadd.f32 %v531, %v652
    %v654 = vpop.f32.mrb[0].mxu0
    %v655 = vadd.f32 %v535, %v654
    %v656 = vpop.f32.mrb[0].mxu0
    %v657 = vadd.f32 %v531, %v656
    %v658 = vpop.f32.mrb[0].mxu0
    %v659 = vadd.f32 %v535, %v658
    %660 = vdwg.mxu0
    %v661 = vld [vmem:[#allocation5 + $0x12] ss:$0 sm:$0xff]
    %v662 = vld [vmem:[#allocation5 + $0x13] ss:$0 sm:$0xff]
    %663 = vadd.xlane.f32.xlu0 %v653
    %v664 = vpop.xlane.xlu0 %663
    %665 = vadd.xlane.f32.xlu0 %v657
    %v666 = vpop.xlane.xlu0 %665
    %v667 = vmul.f32 %v653, %v653
    %v668 = vmul.f32 %v657, %v657
    %669 = vadd.xlane.f32.xlu0 %v667
    %v670 = vpop.xlane.xlu0 %669
    %671 = vadd.xlane.f32.xlu0 %v668
    %v672 = vpop.xlane.xlu0 %671
    %v673 = vmul.f32 %v664, 0.015625
    %v674 = vmul.f32 %v666, 0.015625
    %v675 = vmul.f32 %v670, 0.015625
    %v676 = vmul.f32 %v672, 0.015625
    %v677 = vmul.f32 %v673, %v673
    %v678 = vmul.f32 %v674, %v674
    %v679 = vsub.f32 %v675, %v677
    %v680 = vsub.f32 %v676, %v678
    %v681 = vmax.f32 %v679, 0.0
    %v682 = vmax.f32 %v680, 0.0
    %v683 = vsub.f32 %v653, %v673
    %v684 = vsub.f32 %v657, %v674
    %v685 = vadd.f32 %v681, 1e-05
    %v686 = vadd.f32 %v682, 1e-05
    %v687 = vrsqrt.pop %v685
    %v688 = vrsqrt.pop %v686
    %v689 = vmul.f32 %v683, %v687
    %v690 = vmul.f32 %v684, %v688
    %v691 = vmul.f32 %v689, %v661
    %v692 = vmul.f32 %v690, %v661
    %v693 = vadd.f32 %v691, %v662
    %v694 = vadd.f32 %v692, %v662
    %vm695 = vcmp.ge.f32.partialorder %v693, 0.0
    %vm696 = vcmp.ge.f32.partialorder %v694, 0.0
    %v697 = vmul.f32 %v693, 0.2
    %v698 = vmul.f32 %v694, 0.2
    %v699 = vsel %vm695, %v693, %v697
    %v700 = vsel %vm696, %v694, %v698
    %v701 = vpack.c.bf16 %v700, %v699
    %v702 = vld [vmem:[#allocation7 + $0x1a0] sm:$0xf]
    %v703 = vld [vmem:[#allocation7 + $0x1a8] sm:$0xf]
    %v704 = vld [vmem:[#allocation7 + $0x1b0] sm:$0xf]
    %v705 = vld [vmem:[#allocation7 + $0x1b8] sm:$0xf]
    %v706 = vld [vmem:[#allocation7 + $0x1c0] sm:$0xf]
    %v707 = vld [vmem:[#allocation7 + $0x1c8] sm:$0xf]
    %v708 = vld [vmem:[#allocation7 + $0x1d0] sm:$0xf]
    %v709 = vld [vmem:[#allocation7 + $0x1d8] sm:$0xf]
    %v710 = vld [vmem:[#allocation7 + $0x1e0] sm:$0xf]
    %v711 = vld [vmem:[#allocation7 + $0x1e8] sm:$0xf]
    %v712 = vld [vmem:[#allocation7 + $0x1f0] sm:$0xf]
    %v713 = vld [vmem:[#allocation7 + $0x1f8] sm:$0xf]
    %v714 = vld [vmem:[#allocation7 + $0x200] sm:$0xf]
    %v715 = vld [vmem:[#allocation7 + $0x208] sm:$0xf]
    %v716 = vld [vmem:[#allocation7 + $0x210] sm:$0xf]
    %v717 = vld [vmem:[#allocation7 + $0x218] sm:$0xf]
    %v718 = vld [vmem:[#allocation5 + $0x14] ss:$0 sm:$0xff]
    %v735 = vunpack.c.l.b16 %v702
    %v736 = vunpack.c.l.b16 %v703
    %v737 = vunpack.c.l.b16 %v704
    %v738 = vunpack.c.l.b16 %v705
    %v739 = vunpack.c.l.b16 %v706
    %v740 = vunpack.c.l.b16 %v707
    %v741 = vunpack.c.l.b16 %v708
    %v742 = vunpack.c.l.b16 %v709
    %v743 = vunpack.c.l.b16 %v710
    %v744 = vunpack.c.l.b16 %v711
    %v745 = vunpack.c.l.b16 %v712
    %v746 = vunpack.c.l.b16 %v713
    %v747 = vunpack.c.l.b16 %v714
    %v748 = vunpack.c.l.b16 %v715
    %v749 = vunpack.c.l.b16 %v716
    %v750 = vunpack.c.l.b16 %v717
    %v751 = vpack.c.b16 %v736, %v735
    %v752 = vpack.c.b16 %v738, %v737
    %v753 = vpack.c.b16 %v740, %v739
    %v754 = vpack.c.b16 %v742, %v741
    %v755 = vpack.c.b16 %v744, %v743
    %v756 = vpack.c.b16 %v746, %v745
    %v757 = vpack.c.b16 %v748, %v747
    %v758 = vpack.c.b16 %v750, %v749
    %767 = vmatprep.subr.bf16.mxu0 0
    %768 = vmatpush1.bf16.msra.mxu0 %v751
    %769 = vmatprep.subr.bf16.mxu0 0
    %770 = vmatpush1.bf16.msra.mxu0 %v752
    %771 = vmatprep.subr.bf16.mxu0 0
    %772 = vmatpush1.bf16.msra.mxu0 %v753
    %773 = vmatprep.subr.bf16.mxu0 0
    %774 = vmatpush1.bf16.msra.mxu0 %v754
    %775 = vmatprep.subr.bf16.mxu0 0
    %776 = vmatpush1.bf16.msra.mxu0 %v755
    %777 = vmatprep.subr.bf16.mxu0 0
    %778 = vmatpush1.bf16.msra.mxu0 %v756
    %779 = vmatprep.subr.bf16.mxu0 0
    %780 = vmatpush1.bf16.msra.mxu0 %v757
    %781 = vmatprep.subr.bf16.mxu0 0
    %782 = vmatpush1.bf16.msra.mxu0 %v758
    %783 = vmatprep.subr.bf16.mxu0 0
    %784 = vmatpush1.bf16.msra.mxu0 0
    %785 = vmatprep.subr.bf16.mxu0 0
    %786 = vmatpush1.bf16.msra.mxu0 0
    %787 = vmatprep.subr.bf16.mxu0 0
    %788 = vmatpush1.bf16.msra.mxu0 0
    %789 = vmatprep.subr.bf16.mxu0 0
    %790 = vmatpush1.bf16.msra.mxu0 0
    %791 = vmatprep.subr.bf16.mxu0 0
    %792 = vmatpush1.bf16.msra.mxu0 0
    %793 = vmatprep.subr.bf16.mxu0 0
    %794 = vmatpush1.bf16.msra.mxu0 0
    %795 = vmatprep.subr.bf16.mxu0 0
    %796 = vmatpush1.bf16.msra.mxu0 0
    %797 = vmatprep.subr.bf16.mxu0 0
    %798 = vmatpush1.bf16.msra.mxu0 0
    %799 = vmatprep.mubr.bf16.mxu0 0
    %800 = vmatmul.mubr.bf16.gmra.mrb[0].mxu0 %v701
    %v801 = vpop.f32.mrb[0].mxu0
    %v802 = vadd.f32 %v718, %v801
    %v803 = vpop.f32.mrb[0].mxu0
    %v804 = vpop.f32.mrb[0].mxu0
    %v805 = vadd.f32 %v718, %v804
    %v806 = vpop.f32.mrb[0].mxu0
    %807 = vdwg.mxu0
    %v808 = vld [vmem:[#allocation5 + $0x15] ss:$0 sm:$0xff]
    %v809 = vld [vmem:[#allocation5 + $0x16] ss:$0 sm:$0xff]
    %810 = vadd.xlane.f32.xlu0 %v802
    %v811 = vpop.xlane.xlu0 %810
    %812 = vadd.xlane.f32.xlu0 %v805
    %v813 = vpop.xlane.xlu0 %812
    %v814 = vmul.f32 %v802, %v802
    %v815 = vmul.f32 %v805, %v805
    %816 = vadd.xlane.f32.xlu0 %v814
    %v817 = vpop.xlane.xlu0 %816
    %818 = vadd.xlane.f32.xlu0 %v815
    %v819 = vpop.xlane.xlu0 %818
    %v820 = vmul.f32 %v811, 0.015625
    %v821 = vmul.f32 %v813, 0.015625
    %v822 = vmul.f32 %v817, 0.015625
    %v823 = vmul.f32 %v819, 0.015625
    %v824 = vmul.f32 %v820, %v820
    %v825 = vmul.f32 %v821, %v821
    %v826 = vsub.f32 %v822, %v824
    %v827 = vsub.f32 %v823, %v825
    %v828 = vmax.f32 %v826, 0.0
    %v829 = vmax.f32 %v827, 0.0
    %v830 = vsub.f32 %v802, %v820
    %v831 = vsub.f32 %v805, %v821
    %v832 = vadd.f32 %v828, 1e-05
    %v833 = vadd.f32 %v829, 1e-05
    %v834 = vrsqrt.pop %v832
    %v835 = vrsqrt.pop %v833
    %v836 = vmul.f32 %v830, %v834
    %v837 = vmul.f32 %v831, %v835
    %v838 = vmul.f32 %v836, %v808
    %v839 = vmul.f32 %v837, %v808
    %v840 = vadd.f32 %v838, %v809
    %v841 = vadd.f32 %v839, %v809
    %v842 = vadd.f32 %v840, %v655
    %v843 = vadd.f32 %v841, %v659
    %vm844 = vcmp.ge.f32.partialorder %v842, 0.0
    %vm845 = vcmp.ge.f32.partialorder %v843, 0.0
    %v846 = vmul.f32 %v842, 0.2
    %v847 = vmul.f32 %v843, 0.2
    %v848 = vsel %vm844, %v842, %v846
    %v849 = vsel %vm845, %v843, %v847
    %v850 = vpack.c.bf16 %v849, %v848
    %v851 = vld [vmem:[#allocation7 + $0x220] sm:$0xff]
    %v852 = vld [vmem:[#allocation7 + $0x228] sm:$0xff]
    %v853 = vld [vmem:[#allocation7 + $0x230] sm:$0xff]
    %v854 = vld [vmem:[#allocation7 + $0x238] sm:$0xff]
    %v855 = vld [vmem:[#allocation7 + $0x240] sm:$0xff]
    %v856 = vld [vmem:[#allocation7 + $0x248] sm:$0xff]
    %v857 = vld [vmem:[#allocation7 + $0x250] sm:$0xff]
    %v858 = vld [vmem:[#allocation7 + $0x258] sm:$0xff]
    %v859 = vld [vmem:[#allocation7 + $0x260] sm:$0xff]
    %v860 = vld [vmem:[#allocation7 + $0x268] sm:$0xff]
    %v861 = vld [vmem:[#allocation7 + $0x270] sm:$0xff]
    %v862 = vld [vmem:[#allocation7 + $0x278] sm:$0xff]
    %v863 = vld [vmem:[#allocation7 + $0x280] sm:$0xff]
    %v864 = vld [vmem:[#allocation7 + $0x288] sm:$0xff]
    %v865 = vld [vmem:[#allocation7 + $0x290] sm:$0xff]
    %v866 = vld [vmem:[#allocation7 + $0x298] sm:$0xff]
    %s867 = scalar_lea.vmem [#allocation5], 23
    %v868 = vld [vmem:[%s867] ss:$8 sm:$0x3]
    %v870 = vlaneseq
    %v871 = vshrl.u32 %v870, 7
    %v872 = vsub.s32 0, %v871
    %v873 = vrot.slane %v868, %v872
    %v874 = vlaneseq
    %v875 = vshrl.u32 %v874, 7
    %v876 = vsub.s32 1, %v875
    %v877 = vrot.slane %v868, %v876
    %v896 = vunpack.c.l.b16 %v851
    %v897 = vunpack.c.h.b16 %v851
    %v898 = vunpack.c.l.b16 %v852
    %v899 = vunpack.c.h.b16 %v852
    %v900 = vunpack.c.l.b16 %v853
    %v901 = vunpack.c.h.b16 %v853
    %v902 = vunpack.c.l.b16 %v854
    %v903 = vunpack.c.h.b16 %v854
    %v904 = vunpack.c.l.b16 %v855
    %v905 = vunpack.c.h.b16 %v855
    %v906 = vunpack.c.l.b16 %v856
    %v907 = vunpack.c.h.b16 %v856
    %v908 = vunpack.c.l.b16 %v857
    %v909 = vunpack.c.h.b16 %v857
    %v910 = vunpack.c.l.b16 %v858
    %v911 = vunpack.c.h.b16 %v858
    %v912 = vunpack.c.l.b16 %v859
    %v913 = vunpack.c.h.b16 %v859
    %v914 = vunpack.c.l.b16 %v860
    %v915 = vunpack.c.h.b16 %v860
    %v916 = vunpack.c.l.b16 %v861
    %v917 = vunpack.c.h.b16 %v861
    %v918 = vunpack.c.l.b16 %v862
    %v919 = vunpack.c.h.b16 %v862
    %v920 = vunpack.c.l.b16 %v863
    %v921 = vunpack.c.h.b16 %v863
    %v922 = vunpack.c.l.b16 %v864
    %v923 = vunpack.c.h.b16 %v864
    %v924 = vunpack.c.l.b16 %v865
    %v925 = vunpack.c.h.b16 %v865
    %v926 = vunpack.c.l.b16 %v866
    %v927 = vunpack.c.h.b16 %v866
    %v928 = vpack.c.b16 %v898, %v896
    %v929 = vpack.c.b16 %v899, %v897
    %v930 = vpack.c.b16 %v902, %v900
    %v931 = vpack.c.b16 %v903, %v901
    %v932 = vpack.c.b16 %v906, %v904
    %v933 = vpack.c.b16 %v907, %v905
    %v934 = vpack.c.b16 %v910, %v908
    %v935 = vpack.c.b16 %v911, %v909
    %v936 = vpack.c.b16 %v914, %v912
    %v937 = vpack.c.b16 %v915, %v913
    %v938 = vpack.c.b16 %v918, %v916
    %v939 = vpack.c.b16 %v919, %v917
    %v940 = vpack.c.b16 %v922, %v920
    %v941 = vpack.c.b16 %v923, %v921
    %v942 = vpack.c.b16 %v926, %v924
    %v943 = vpack.c.b16 %v927, %v925
    %960 = vmatprep.subr.bf16.mxu0 %v929
    %961 = vmatpush1.bf16.msra.mxu0 %v928
    %962 = vmatprep.subr.bf16.mxu0 %v931
    %963 = vmatpush1.bf16.msra.mxu0 %v930
    %964 = vmatprep.subr.bf16.mxu0 %v933
    %965 = vmatpush1.bf16.msra.mxu0 %v932
    %966 = vmatprep.subr.bf16.mxu0 %v935
    %967 = vmatpush1.bf16.msra.mxu0 %v934
    %968 = vmatprep.subr.bf16.mxu0 %v937
    %969 = vmatpush1.bf16.msra.mxu0 %v936
    %970 = vmatprep.subr.bf16.mxu0 %v939
    %971 = vmatpush1.bf16.msra.mxu0 %v938
    %972 = vmatprep.subr.bf16.mxu0 %v941
    %973 = vmatpush1.bf16.msra.mxu0 %v940
    %974 = vmatprep.subr.bf16.mxu0 %v943
    %975 = vmatpush1.bf16.msra.mxu0 %v942
    %976 = vmatprep.subr.bf16.mxu0 0
    %977 = vmatpush1.bf16.msra.mxu0 0
    %978 = vmatprep.subr.bf16.mxu0 0
    %979 = vmatpush1.bf16.msra.mxu0 0
    %980 = vmatprep.subr.bf16.mxu0 0
    %981 = vmatpush1.bf16.msra.mxu0 0
    %982 = vmatprep.subr.bf16.mxu0 0
    %983 = vmatpush1.bf16.msra.mxu0 0
    %984 = vmatprep.subr.bf16.mxu0 0
    %985 = vmatpush1.bf16.msra.mxu0 0
    %986 = vmatprep.subr.bf16.mxu0 0
    %987 = vmatpush1.bf16.msra.mxu0 0
    %988 = vmatprep.subr.bf16.mxu0 0
    %989 = vmatpush1.bf16.msra.mxu0 0
    %990 = vmatprep.subr.bf16.mxu0 0
    %991 = vmatpush1.bf16.msra.mxu0 0
    %992 = vmatprep.mubr.bf16.mxu0 0
    %993 = vmatmul.mubr.bf16.gmra.mrb[0].mxu0 %v850
    %v994 = vpop.f32.mrb[0].mxu0
    %v995 = vadd.f32 %v873, %v994
    %v996 = vpop.f32.mrb[0].mxu0
    %v997 = vadd.f32 %v877, %v996
    %v998 = vpop.f32.mrb[0].mxu0
    %v999 = vadd.f32 %v873, %v998
    %v1000 = vpop.f32.mrb[0].mxu0
    %v1001 = vadd.f32 %v877, %v1000
    %1002 = vdwg.mxu0
    %v1003 = vld [vmem:[#allocation5 + $0x20] ss:$0 sm:$0xff]
    %v1004 = vld [vmem:[#allocation5 + $0x21] ss:$0 sm:$0xff]
    %1005 = vadd.xlane.f32.xlu0 %v995
    %v1006 = vpop.xlane.xlu0 %1005
    %1007 = vadd.xlane.f32.xlu0 %v999
    %v1008 = vpop.xlane.xlu0 %1007
    %v1009 = vmul.f32 %v995, %v995
    %v1010 = vmul.f32 %v999, %v999
    %1011 = vadd.xlane.f32.xlu0 %v1009
    %v1012 = vpop.xlane.xlu0 %1011
    %1013 = vadd.xlane.f32.xlu0 %v1010
    %v1014 = vpop.xlane.xlu0 %1013
    %v1015 = vmul.f32 %v1006, 0.03125
    %v1016 = vmul.f32 %v1008, 0.03125
    %v1017 = vmul.f32 %v1012, 0.03125
    %v1018 = vmul.f32 %v1014, 0.03125
    %v1019 = vmul.f32 %v1015, %v1015
    %v1020 = vmul.f32 %v1016, %v1016
    %v1021 = vsub.f32 %v1017, %v1019
    %v1022 = vsub.f32 %v1018, %v1020
    %v1023 = vmax.f32 %v1021, 0.0
    %v1024 = vmax.f32 %v1022, 0.0
    %v1025 = vsub.f32 %v995, %v1015
    %v1026 = vsub.f32 %v999, %v1016
    %v1027 = vadd.f32 %v1023, 1e-05
    %v1028 = vadd.f32 %v1024, 1e-05
    %v1029 = vrsqrt.pop %v1027
    %v1030 = vrsqrt.pop %v1028
    %v1031 = vmul.f32 %v1025, %v1029
    %v1032 = vmul.f32 %v1026, %v1030
    %v1033 = vmul.f32 %v1031, %v1003
    %v1034 = vmul.f32 %v1032, %v1003
    %v1035 = vadd.f32 %v1033, %v1004
    %v1036 = vadd.f32 %v1034, %v1004
    %vm1037 = vcmp.ge.f32.partialorder %v1035, 0.0
    %vm1038 = vcmp.ge.f32.partialorder %v1036, 0.0
    %v1039 = vmul.f32 %v1035, 0.2
    %v1040 = vmul.f32 %v1036, 0.2
    %v1041 = vsel %vm1037, %v1035, %v1039
    %v1042 = vsel %vm1038, %v1036, %v1040
    %v1043 = vpack.c.bf16 %v1042, %v1041
    %v1044 = vld [vmem:[#allocation7 + $0x2a0] sm:$0xf]
    %v1045 = vld [vmem:[#allocation7 + $0x2a8] sm:$0xf]
    %v1046 = vld [vmem:[#allocation7 + $0x2b0] sm:$0xf]
    %v1047 = vld [vmem:[#allocation7 + $0x2b8] sm:$0xf]
    %v1048 = vld [vmem:[#allocation7 + $0x2c0] sm:$0xf]
    %v1049 = vld [vmem:[#allocation7 + $0x2c8] sm:$0xf]
    %v1050 = vld [vmem:[#allocation7 + $0x2d0] sm:$0xf]
    %v1051 = vld [vmem:[#allocation7 + $0x2d8] sm:$0xf]
    %v1052 = vld [vmem:[#allocation7 + $0x2e0] sm:$0xf]
    %v1053 = vld [vmem:[#allocation7 + $0x2e8] sm:$0xf]
    %v1054 = vld [vmem:[#allocation7 + $0x2f0] sm:$0xf]
    %v1055 = vld [vmem:[#allocation7 + $0x2f8] sm:$0xf]
    %v1056 = vld [vmem:[#allocation7 + $0x300] sm:$0xf]
    %v1057 = vld [vmem:[#allocation7 + $0x308] sm:$0xf]
    %v1058 = vld [vmem:[#allocation7 + $0x310] sm:$0xf]
    %v1059 = vld [vmem:[#allocation7 + $0x318] sm:$0xf]
    %v1060 = vld [vmem:[#allocation5 + $0x22] ss:$0 sm:$0xff]
    %v1077 = vunpack.c.l.b16 %v1044
    %v1078 = vunpack.c.l.b16 %v1045
    %v1079 = vunpack.c.l.b16 %v1046
    %v1080 = vunpack.c.l.b16 %v1047
    %v1081 = vunpack.c.l.b16 %v1048
    %v1082 = vunpack.c.l.b16 %v1049
    %v1083 = vunpack.c.l.b16 %v1050
    %v1084 = vunpack.c.l.b16 %v1051
    %v1085 = vunpack.c.l.b16 %v1052
    %v1086 = vunpack.c.l.b16 %v1053
    %v1087 = vunpack.c.l.b16 %v1054
    %v1088 = vunpack.c.l.b16 %v1055
    %v1089 = vunpack.c.l.b16 %v1056
    %v1090 = vunpack.c.l.b16 %v1057
    %v1091 = vunpack.c.l.b16 %v1058
    %v1092 = vunpack.c.l.b16 %v1059
    %v1093 = vpack.c.b16 %v1078, %v1077
    %v1094 = vpack.c.b16 %v1080, %v1079
    %v1095 = vpack.c.b16 %v1082, %v1081
    %v1096 = vpack.c.b16 %v1084, %v1083
    %v1097 = vpack.c.b16 %v1086, %v1085
    %v1098 = vpack.c.b16 %v1088, %v1087
    %v1099 = vpack.c.b16 %v1090, %v1089
    %v1100 = vpack.c.b16 %v1092, %v1091
    %1109 = vmatprep.subr.bf16.mxu0 0
    %1110 = vmatpush1.bf16.msra.mxu0 %v1093
    %1111 = vmatprep.subr.bf16.mxu0 0
    %1112 = vmatpush1.bf16.msra.mxu0 %v1094
    %1113 = vmatprep.subr.bf16.mxu0 0
    %1114 = vmatpush1.bf16.msra.mxu0 %v1095
    %1115 = vmatprep.subr.bf16.mxu0 0
    %1116 = vmatpush1.bf16.msra.mxu0 %v1096
    %1117 = vmatprep.subr.bf16.mxu0 0
    %1118 = vmatpush1.bf16.msra.mxu0 %v1097
    %1119 = vmatprep.subr.bf16.mxu0 0
    %1120 = vmatpush1.bf16.msra.mxu0 %v1098
    %1121 = vmatprep.subr.bf16.mxu0 0
    %1122 = vmatpush1.bf16.msra.mxu0 %v1099
    %1123 = vmatprep.subr.bf16.mxu0 0
    %1124 = vmatpush1.bf16.msra.mxu0 %v1100
    %1125 = vmatprep.subr.bf16.mxu0 0
    %1126 = vmatpush1.bf16.msra.mxu0 0
    %1127 = vmatprep.subr.bf16.mxu0 0
    %1128 = vmatpush1.bf16.msra.mxu0 0
    %1129 = vmatprep.subr.bf16.mxu0 0
    %1130 = vmatpush1.bf16.msra.mxu0 0
    %1131 = vmatprep.subr.bf16.mxu0 0
    %1132 = vmatpush1.bf16.msra.mxu0 0
    %1133 = vmatprep.subr.bf16.mxu0 0
    %1134 = vmatpush1.bf16.msra.mxu0 0
    %1135 = vmatprep.subr.bf16.mxu0 0
    %1136 = vmatpush1.bf16.msra.mxu0 0
    %1137 = vmatprep.subr.bf16.mxu0 0
    %1138 = vmatpush1.bf16.msra.mxu0 0
    %1139 = vmatprep.subr.bf16.mxu0 0
    %1140 = vmatpush1.bf16.msra.mxu0 0
    %1141 = vmatprep.mubr.bf16.mxu0 0
    %1142 = vmatmul.mubr.bf16.gmra.mrb[0].mxu0 %v1043
    %v1143 = vpop.f32.mrb[0].mxu0
    %v1144 = vadd.f32 %v1060, %v1143
    %v1145 = vpop.f32.mrb[0].mxu0
    %v1146 = vpop.f32.mrb[0].mxu0
    %v1147 = vadd.f32 %v1060, %v1146
    %v1148 = vpop.f32.mrb[0].mxu0
    %1149 = vdwg.mxu0
    %v1150 = vld [vmem:[#allocation5 + $0x23] ss:$0 sm:$0xff]
    %v1151 = vld [vmem:[#allocation5 + $0x24] ss:$0 sm:$0xff]
    %1152 = vadd.xlane.f32.xlu0 %v1144
    %v1153 = vpop.xlane.xlu0 %1152
    %1154 = vadd.xlane.f32.xlu0 %v1147
    %v1155 = vpop.xlane.xlu0 %1154
    %v1156 = vmul.f32 %v1144, %v1144
    %v1157 = vmul.f32 %v1147, %v1147
    %1158 = vadd.xlane.f32.xlu0 %v1156
    %v1159 = vpop.xlane.xlu0 %1158
    %1160 = vadd.xlane.f32.xlu0 %v1157
    %v1161 = vpop.xlane.xlu0 %1160
    %v1162 = vmul.f32 %v1153, 0.03125
    %v1163 = vmul.f32 %v1155, 0.03125
    %v1164 = vmul.f32 %v1159, 0.03125
    %v1165 = vmul.f32 %v1161, 0.03125
    %v1166 = vmul.f32 %v1162, %v1162
    %v1167 = vmul.f32 %v1163, %v1163
    %v1168 = vsub.f32 %v1164, %v1166
    %v1169 = vsub.f32 %v1165, %v1167
    %v1170 = vmax.f32 %v1168, 0.0
    %v1171 = vmax.f32 %v1169, 0.0
    %v1172 = vsub.f32 %v1144, %v1162
    %v1173 = vsub.f32 %v1147, %v1163
    %v1174 = vadd.f32 %v1170, 1e-05
    %v1175 = vadd.f32 %v1171, 1e-05
    %v1176 = vrsqrt.pop %v1174
    %v1177 = vrsqrt.pop %v1175
    %v1178 = vmul.f32 %v1172, %v1176
    %v1179 = vmul.f32 %v1173, %v1177
    %v1180 = vmul.f32 %v1178, %v1150
    %v1181 = vmul.f32 %v1179, %v1150
    %v1182 = vadd.f32 %v1180, %v1151
    %v1183 = vadd.f32 %v1181, %v1151
    %v1184 = vadd.f32 %v1182, %v997
    %v1185 = vadd.f32 %v1183, %v1001
    %vm1186 = vcmp.ge.f32.partialorder %v1184, 0.0
    %vm1187 = vcmp.ge.f32.partialorder %v1185, 0.0
    %v1188 = vmul.f32 %v1184, 0.2
    %v1189 = vmul.f32 %v1185, 0.2
    %v1190 = vsel %vm1186, %v1184, %v1188
    %v1191 = vsel %vm1187, %v1185, %v1189
    %v1192 = vpack.c.bf16 %v1191, %v1190
    %v1193 = vld [vmem:[#allocation7 + $0x320] sm:$0xf]
    %v1194 = vld [vmem:[#allocation7 + $0x328] sm:$0xf]
    %v1195 = vld [vmem:[#allocation7 + $0x330] sm:$0xf]
    %v1196 = vld [vmem:[#allocation7 + $0x338] sm:$0xf]
    %v1197 = vld [vmem:[#allocation7 + $0x340] sm:$0xf]
    %v1198 = vld [vmem:[#allocation7 + $0x348] sm:$0xf]
    %v1199 = vld [vmem:[#allocation7 + $0x350] sm:$0xf]
    %v1200 = vld [vmem:[#allocation7 + $0x358] sm:$0xf]
    %v1201 = vld [vmem:[#allocation7 + $0x360] sm:$0xf]
    %v1202 = vld [vmem:[#allocation7 + $0x368] sm:$0xf]
    %v1203 = vld [vmem:[#allocation7 + $0x370] sm:$0xf]
    %v1204 = vld [vmem:[#allocation7 + $0x378] sm:$0xf]
    %v1205 = vld [vmem:[#allocation7 + $0x380] sm:$0xf]
    %v1206 = vld [vmem:[#allocation7 + $0x388] sm:$0xf]
    %v1207 = vld [vmem:[#allocation7 + $0x390] sm:$0xf]
    %v1208 = vld [vmem:[#allocation7 + $0x398] sm:$0xf]
    %v1209 = vld [vmem:[#allocation5 + $0x25] ss:$0 sm:$0xff]
    %v1226 = vunpack.c.l.b16 %v1193
    %v1227 = vunpack.c.l.b16 %v1194
    %v1228 = vunpack.c.l.b16 %v1195
    %v1229 = vunpack.c.l.b16 %v1196
    %v1230 = vunpack.c.l.b16 %v1197
    %v1231 = vunpack.c.l.b16 %v1198
    %v1232 = vunpack.c.l.b16 %v1199
    %v1233 = vunpack.c.l.b16 %v1200
    %v1234 = vunpack.c.l.b16 %v1201
    %v1235 = vunpack.c.l.b16 %v1202
    %v1236 = vunpack.c.l.b16 %v1203
    %v1237 = vunpack.c.l.b16 %v1204
    %v1238 = vunpack.c.l.b16 %v1205
    %v1239 = vunpack.c.l.b16 %v1206
    %v1240 = vunpack.c.l.b16 %v1207
    %v1241 = vunpack.c.l.b16 %v1208
    %v1242 = vpack.c.b16 %v1227, %v1226
    %v1243 = vpack.c.b16 %v1229, %v1228
    %v1244 = vpack.c.b16 %v1231, %v1230
    %v1245 = vpack.c.b16 %v1233, %v1232
    %v1246 = vpack.c.b16 %v1235, %v1234
    %v1247 = vpack.c.b16 %v1237, %v1236
    %v1248 = vpack.c.b16 %v1239, %v1238
    %v1249 = vpack.c.b16 %v1241, %v1240
    %1258 = vmatprep.subr.bf16.mxu0 0
    %1259 = vmatpush1.bf16.msra.mxu0 %v1242
    %1260 = vmatprep.subr.bf16.mxu0 0
    %1261 = vmatpush1.bf16.msra.mxu0 %v1243
    %1262 = vmatprep.subr.bf16.mxu0 0
    %1263 = vmatpush1.bf16.msra.mxu0 %v1244
    %1264 = vmatprep.subr.bf16.mxu0 0
    %1265 = vmatpush1.bf16.msra.mxu0 %v1245
    %1266 = vmatprep.subr.bf16.mxu0 0
    %1267 = vmatpush1.bf16.msra.mxu0 %v1246
    %1268 = vmatprep.subr.bf16.mxu0 0
    %1269 = vmatpush1.bf16.msra.mxu0 %v1247
    %1270 = vmatprep.subr.bf16.mxu0 0
    %1271 = vmatpush1.bf16.msra.mxu0 %v1248
    %1272 = vmatprep.subr.bf16.mxu0 0
    %1273 = vmatpush1.bf16.msra.mxu0 %v1249
    %1274 = vmatprep.subr.bf16.mxu0 0
    %1275 = vmatpush1.bf16.msra.mxu0 0
    %1276 = vmatprep.subr.bf16.mxu0 0
    %1277 = vmatpush1.bf16.msra.mxu0 0
    %1278 = vmatprep.subr.bf16.mxu0 0
    %1279 = vmatpush1.bf16.msra.mxu0 0
    %1280 = vmatprep.subr.bf16.mxu0 0
    %1281 = vmatpush1.bf16.msra.mxu0 0
    %1282 = vmatprep.subr.bf16.mxu0 0
    %1283 = vmatpush1.bf16.msra.mxu0 0
    %1284 = vmatprep.subr.bf16.mxu0 0
    %1285 = vmatpush1.bf16.msra.mxu0 0
    %1286 = vmatprep.subr.bf16.mxu0 0
    %1287 = vmatpush1.bf16.msra.mxu0 0
    %1288 = vmatprep.subr.bf16.mxu0 0
    %1289 = vmatpush1.bf16.msra.mxu0 0
    %1290 = vmatprep.mubr.bf16.mxu0 0
    %1291 = vmatmul.mubr.bf16.gmra.mrb[0].mxu0 %v1192
    %v1292 = vpop.f32.mrb[0].mxu0
    %v1293 = vadd.f32 %v1209, %v1292
    %v1294 = vpop.f32.mrb[0].mxu0
    %v1295 = vpop.f32.mrb[0].mxu0
    %v1296 = vadd.f32 %v1209, %v1295
    %v1297 = vpop.f32.mrb[0].mxu0
    %1298 = vdwg.mxu0
    %v1299 = vadd.f32 %v1293, %v1190
    %v1300 = vadd.f32 %v1296, %v1191
    %v1301 = vpack.c.bf16 %v1300, %v1299
    %v1302 = vld [vmem:[#allocation7 + $0x3a0] sm:$0xf]
    %v1303 = vld [vmem:[#allocation7 + $0x3a8] sm:$0xf]
    %v1304 = vld [vmem:[#allocation7 + $0x3b0] sm:$0xf]
    %v1305 = vld [vmem:[#allocation7 + $0x3b8] sm:$0xf]
    %v1306 = vld [vmem:[#allocation7 + $0x3c0] sm:$0xf]
    %v1307 = vld [vmem:[#allocation7 + $0x3c8] sm:$0xf]
    %v1308 = vld [vmem:[#allocation7 + $0x3d0] sm:$0xf]
    %v1309 = vld [vmem:[#allocation7 + $0x3d8] sm:$0xf]
    %v1310 = vld [vmem:[#allocation7 + $0x3e0] sm:$0xf]
    %v1311 = vld [vmem:[#allocation7 + $0x3e8] sm:$0xf]
    %v1312 = vld [vmem:[#allocation7 + $0x3f0] sm:$0xf]
    %v1313 = vld [vmem:[#allocation7 + $0x3f8] sm:$0xf]
    %v1314 = vld [vmem:[#allocation7 + $0x400] sm:$0xf]
    %v1315 = vld [vmem:[#allocation7 + $0x408] sm:$0xf]
    %v1316 = vld [vmem:[#allocation7 + $0x410] sm:$0xf]
    %v1317 = vld [vmem:[#allocation7 + $0x418] sm:$0xf]
    %v1318 = vld [vmem:[#allocation5 + $0x26] ss:$0 sm:$0xff]
    %v1335 = vunpack.c.l.b16 %v1302
    %v1336 = vunpack.c.l.b16 %v1303
    %v1337 = vunpack.c.l.b16 %v1304
    %v1338 = vunpack.c.l.b16 %v1305
    %v1339 = vunpack.c.l.b16 %v1306
    %v1340 = vunpack.c.l.b16 %v1307
    %v1341 = vunpack.c.l.b16 %v1308
    %v1342 = vunpack.c.l.b16 %v1309
    %v1343 = vunpack.c.l.b16 %v1310
    %v1344 = vunpack.c.l.b16 %v1311
    %v1345 = vunpack.c.l.b16 %v1312
    %v1346 = vunpack.c.l.b16 %v1313
    %v1347 = vunpack.c.l.b16 %v1314
    %v1348 = vunpack.c.l.b16 %v1315
    %v1349 = vunpack.c.l.b16 %v1316
    %v1350 = vunpack.c.l.b16 %v1317
    %v1351 = vpack.c.b16 %v1336, %v1335
    %v1352 = vpack.c.b16 %v1338, %v1337
    %v1353 = vpack.c.b16 %v1340, %v1339
    %v1354 = vpack.c.b16 %v1342, %v1341
    %v1355 = vpack.c.b16 %v1344, %v1343
    %v1356 = vpack.c.b16 %v1346, %v1345
    %v1357 = vpack.c.b16 %v1348, %v1347
    %v1358 = vpack.c.b16 %v1350, %v1349
    %1367 = vmatprep.subr.bf16.mxu0 0
    %1368 = vmatpush1.bf16.msra.mxu0 %v1351
    %1369 = vmatprep.subr.bf16.mxu0 0
    %1370 = vmatpush1.bf16.msra.mxu0 %v1352
    %1371 = vmatprep.subr.bf16.mxu0 0
    %1372 = vmatpush1.bf16.msra.mxu0 %v1353
    %1373 = vmatprep.subr.bf16.mxu0 0
    %1374 = vmatpush1.bf16.msra.mxu0 %v1354
    %1375 = vmatprep.subr.bf16.mxu0 0
    %1376 = vmatpush1.bf16.msra.mxu0 %v1355
    %1377 = vmatprep.subr.bf16.mxu0 0
    %1378 = vmatpush1.bf16.msra.mxu0 %v1356
    %1379 = vmatprep.subr.bf16.mxu0 0
    %1380 = vmatpush1.bf16.msra.mxu0 %v1357
    %1381 = vmatprep.subr.bf16.mxu0 0
    %1382 = vmatpush1.bf16.msra.mxu0 %v1358
    %1383 = vmatprep.subr.bf16.mxu0 0
    %1384 = vmatpush1.bf16.msra.mxu0 0
    %1385 = vmatprep.subr.bf16.mxu0 0
    %1386 = vmatpush1.bf16.msra.mxu0 0
    %1387 = vmatprep.subr.bf16.mxu0 0
    %1388 = vmatpush1.bf16.msra.mxu0 0
    %1389 = vmatprep.subr.bf16.mxu0 0
    %1390 = vmatpush1.bf16.msra.mxu0 0
    %1391 = vmatprep.subr.bf16.mxu0 0
    %1392 = vmatpush1.bf16.msra.mxu0 0
    %1393 = vmatprep.subr.bf16.mxu0 0
    %1394 = vmatpush1.bf16.msra.mxu0 0
    %1395 = vmatprep.subr.bf16.mxu0 0
    %1396 = vmatpush1.bf16.msra.mxu0 0
    %1397 = vmatprep.subr.bf16.mxu0 0
    %1398 = vmatpush1.bf16.msra.mxu0 0
    %1399 = vmatprep.mubr.bf16.mxu0 0
    %1400 = vmatmul.mubr.bf16.gmra.mrb[0].mxu0 %v1301
    %v1401 = vpop.f32.mrb[0].mxu0
    %v1402 = vadd.f32 %v1318, %v1401
    %v1403 = vpop.f32.mrb[0].mxu0
    %v1404 = vpop.f32.mrb[0].mxu0
    %v1405 = vadd.f32 %v1318, %v1404
    %v1406 = vpop.f32.mrb[0].mxu0
    %1407 = vdwg.mxu0
    %v1408 = vld [vmem:[#allocation5 + $0x27] ss:$0 sm:$0xff]
    %v1409 = vld [vmem:[#allocation5 + $0x30] ss:$0 sm:$0xff]
    %1410 = vadd.xlane.f32.xlu0 %v1402
    %v1411 = vpop.xlane.xlu0 %1410
    %1412 = vadd.xlane.f32.xlu0 %v1405
    %v1413 = vpop.xlane.xlu0 %1412
    %v1414 = vmul.f32 %v1402, %v1402
    %v1415 = vmul.f32 %v1405, %v1405
    %1416 = vadd.xlane.f32.xlu0 %v1414
    %v1417 = vpop.xlane.xlu0 %1416
    %1418 = vadd.xlane.f32.xlu0 %v1415
    %v1419 = vpop.xlane.xlu0 %1418
    %v1420 = vmul.f32 %v1411, 0.0625
    %v1421 = vmul.f32 %v1413, 0.0625
    %v1422 = vmul.f32 %v1417, 0.0625
    %v1423 = vmul.f32 %v1419, 0.0625
    %v1424 = vmul.f32 %v1420, %v1420
    %v1425 = vmul.f32 %v1421, %v1421
    %v1426 = vsub.f32 %v1422, %v1424
    %v1427 = vsub.f32 %v1423, %v1425
    %v1428 = vmax.f32 %v1426, 0.0
    %v1429 = vmax.f32 %v1427, 0.0
    %v1430 = vsub.f32 %v1402, %v1420
    %v1431 = vsub.f32 %v1405, %v1421
    %v1432 = vadd.f32 %v1428, 1e-05
    %v1433 = vadd.f32 %v1429, 1e-05
    %v1434 = vrsqrt.pop %v1432
    %v1435 = vrsqrt.pop %v1433
    %v1436 = vmul.f32 %v1430, %v1434
    %v1437 = vmul.f32 %v1431, %v1435
    %v1438 = vmul.f32 %v1436, %v1408
    %v1439 = vmul.f32 %v1437, %v1408
    %v1440 = vadd.f32 %v1438, %v1409
    %v1441 = vadd.f32 %v1439, %v1409
    %vm1442 = vcmp.ge.f32.partialorder %v1440, 0.0
    %vm1443 = vcmp.ge.f32.partialorder %v1441, 0.0
    %v1444 = vmul.f32 %v1440, 0.2
    %v1445 = vmul.f32 %v1441, 0.2
    %v1446 = vsel %vm1442, %v1440, %v1444
    %v1447 = vsel %vm1443, %v1441, %v1445
    %v1448 = vpack.c.bf16 %v1447, %v1446
    %v1449 = vld [vmem:[#allocation7 + $0x420] sm:$0xf]
    %v1450 = vld [vmem:[#allocation7 + $0x428] sm:$0xf]
    %v1451 = vld [vmem:[#allocation7 + $0x430] sm:$0xf]
    %v1452 = vld [vmem:[#allocation7 + $0x438] sm:$0xf]
    %v1453 = vld [vmem:[#allocation7 + $0x440] sm:$0xf]
    %v1454 = vld [vmem:[#allocation7 + $0x448] sm:$0xf]
    %v1455 = vld [vmem:[#allocation7 + $0x450] sm:$0xf]
    %v1456 = vld [vmem:[#allocation7 + $0x458] sm:$0xf]
    %v1457 = vld [vmem:[#allocation7 + $0x460] sm:$0xf]
    %v1458 = vld [vmem:[#allocation7 + $0x468] sm:$0xf]
    %v1459 = vld [vmem:[#allocation7 + $0x470] sm:$0xf]
    %v1460 = vld [vmem:[#allocation7 + $0x478] sm:$0xf]
    %v1461 = vld [vmem:[#allocation7 + $0x480] sm:$0xf]
    %v1462 = vld [vmem:[#allocation7 + $0x488] sm:$0xf]
    %v1463 = vld [vmem:[#allocation7 + $0x490] sm:$0xf]
    %v1464 = vld [vmem:[#allocation7 + $0x498] sm:$0xf]
    %v1465 = vld [vmem:[#allocation5 + $0x31] ss:$0 sm:$0xff]
    %v1482 = vunpack.c.l.b16 %v1449
    %v1483 = vunpack.c.l.b16 %v1450
    %v1484 = vunpack.c.l.b16 %v1451
    %v1485 = vunpack.c.l.b16 %v1452
    %v1486 = vunpack.c.l.b16 %v1453
    %v1487 = vunpack.c.l.b16 %v1454
    %v1488 = vunpack.c.l.b16 %v1455
    %v1489 = vunpack.c.l.b16 %v1456
    %v1490 = vunpack.c.l.b16 %v1457
    %v1491 = vunpack.c.l.b16 %v1458
    %v1492 = vunpack.c.l.b16 %v1459
    %v1493 = vunpack.c.l.b16 %v1460
    %v1494 = vunpack.c.l.b16 %v1461
    %v1495 = vunpack.c.l.b16 %v1462
    %v1496 = vunpack.c.l.b16 %v1463
    %v1497 = vunpack.c.l.b16 %v1464
    %v1498 = vpack.c.b16 %v1483, %v1482
    %v1499 = vpack.c.b16 %v1485, %v1484
    %v1500 = vpack.c.b16 %v1487, %v1486
    %v1501 = vpack.c.b16 %v1489, %v1488
    %v1502 = vpack.c.b16 %v1491, %v1490
    %v1503 = vpack.c.b16 %v1493, %v1492
    %v1504 = vpack.c.b16 %v1495, %v1494
    %v1505 = vpack.c.b16 %v1497, %v1496
    %1514 = vmatprep.subr.bf16.mxu0 0
    %1515 = vmatpush1.bf16.msra.mxu0 %v1498
    %1516 = vmatprep.subr.bf16.mxu0 0
    %1517 = vmatpush1.bf16.msra.mxu0 %v1499
    %1518 = vmatprep.subr.bf16.mxu0 0
    %1519 = vmatpush1.bf16.msra.mxu0 %v1500
    %1520 = vmatprep.subr.bf16.mxu0 0
    %1521 = vmatpush1.bf16.msra.mxu0 %v1501
    %1522 = vmatprep.subr.bf16.mxu0 0
    %1523 = vmatpush1.bf16.msra.mxu0 %v1502
    %1524 = vmatprep.subr.bf16.mxu0 0
    %1525 = vmatpush1.bf16.msra.mxu0 %v1503
    %1526 = vmatprep.subr.bf16.mxu0 0
    %1527 = vmatpush1.bf16.msra.mxu0 %v1504
    %1528 = vmatprep.subr.bf16.mxu0 0
    %1529 = vmatpush1.bf16.msra.mxu0 %v1505
    %1530 = vmatprep.subr.bf16.mxu0 0
    %1531 = vmatpush1.bf16.msra.mxu0 0
    %1532 = vmatprep.subr.bf16.mxu0 0
    %1533 = vmatpush1.bf16.msra.mxu0 0
    %1534 = vmatprep.subr.bf16.mxu0 0
    %1535 = vmatpush1.bf16.msra.mxu0 0
    %1536 = vmatprep.subr.bf16.mxu0 0
    %1537 = vmatpush1.bf16.msra.mxu0 0
    %1538 = vmatprep.subr.bf16.mxu0 0
    %1539 = vmatpush1.bf16.msra.mxu0 0
    %1540 = vmatprep.subr.bf16.mxu0 0
    %1541 = vmatpush1.bf16.msra.mxu0 0
    %1542 = vmatprep.subr.bf16.mxu0 0
    %1543 = vmatpush1.bf16.msra.mxu0 0
    %1544 = vmatprep.subr.bf16.mxu0 0
    %1545 = vmatpush1.bf16.msra.mxu0 0
    %1546 = vmatprep.mubr.bf16.mxu0 0
    %1547 = vmatmul.mubr.bf16.gmra.mrb[0].mxu0 %v1448
    %v1548 = vpop.f32.mrb[0].mxu0
    %v1549 = vadd.f32 %v1465, %v1548
    %v1550 = vpop.f32.mrb[0].mxu0
    %v1551 = vpop.f32.mrb[0].mxu0
    %v1552 = vadd.f32 %v1465, %v1551
    %v1553 = vpop.f32.mrb[0].mxu0
    %1554 = vdwg.mxu0
    %1555 = vst [vmem:[#allocation8] sm:$0xff] %v1549
    %1556 = vst [vmem:[#allocation8 + $0x8] sm:$0xff] %v1552
    // Predicated region
    $region26: #{tpu_custom_call.1} parent=1 // pred_check
      _
    $region27: #{tpu_custom_call.1} parent=1 // pred_check_branch
      %1558 = sbr.rel (0) target = $region29
    $region28: #{tpu_custom_call.1} parent=1 // pred_region
      %s1560 = ssub.s32 256, 256
      %1561 = vsyncadd [#allocation4], %s1560
      %s1562 = sshll.u32 [#allocation8], 4
      %s1563 = int_to_ptr.vmem [resolvable:$true] %s1562
      %1568 = dma.vmem_to_hbm [thread:$0]  %s1563, 256, %s3, [#allocation4], 128, 128, 8
    $region29: #{tpu_custom_call.1} parent=1 // pred_fallthru
      _
    // Predicated region
    $region30: #{tpu_custom_call.1} parent=1 // pred_check
      _
    $region31: #{tpu_custom_call.1} parent=1 // pred_check_branch
      %1570 = sbr.rel (0) target = $region33
    $region32: #{tpu_custom_call.1} parent=1 // pred_region
      %1571 = dma.done [#allocation4], 256
    $region33: #{tpu_custom_call.1} parent=1 // pred_fallthru
      _
    %1572 = vsyncpa [#allocation3], 1
    %1573 = vsyncpa [#allocation6], 1
    %1574 = vsyncpa [#allocation4], 1

</llo_original>
